<compile_context>
chip_gen: v6e
topology: v6e:2x2x1
jax: 0.10.0
libtpu: 0.0.40
codegen_flags: <defaults>
</compile_context>

<pallas_src>
import jax
import jax.numpy as jnp
from jax import lax
from jax.experimental import pallas as pl
from jax.experimental.pallas import tpu as pltpu


_MIN_VMEM = 32 * 1024 * 1024
_MAX_VMEM = 64 * 1024 * 1024   # stay within v7x physical VMEM


def _round_up(x, m):
    return ((x + m - 1) // m) * m


def _pad_to(x, shape):
    return jnp.pad(x, [(0, t - s) for s, t in zip(x.shape, shape)])


def _vmem_limit(block_bytes, scratch_bytes=0):
    """Double-buffered block estimate with headroom, clamped to safe bounds."""
    est = 2 * sum(block_bytes) + scratch_bytes
    return int(min(max(est * 3 // 2, _MIN_VMEM), _MAX_VMEM))


# ----------------------------------------------------------------------------
# Kernel 1: batched input-path gate matmul   GI = X @ W_i_cat + b_i_cat  (bf16 out)
# ----------------------------------------------------------------------------
def _gate_input_kernel(x_ref, wi_ref, bi_ref, gi_ref):
    acc = jnp.dot(x_ref[...], wi_ref[...], preferred_element_type=jnp.float32)
    gi_ref[...] = (acc + bi_ref[...]).astype(gi_ref.dtype)


def _row_matmul_gates(x, wi_cat, bi_cat, tm_cap=512):
    """(R, Hp) @ (Hp, 3Hp) + bias -> (R, 3Hp) bf16, tiled over rows."""
    R, Hp = x.shape
    G = wi_cat.shape[1]
    tm = min(tm_cap, R)
    Rp = _round_up(R, tm)
    x = _pad_to(x, (Rp, Hp))
    vmem = _vmem_limit([tm * Hp * 2, Hp * G * 2, G * 4, tm * G * 2])
    out = pl.pallas_call(
        _gate_input_kernel,
        out_shape=jax.ShapeDtypeStruct((Rp, G), jnp.bfloat16),
        grid=(Rp // tm,),
        in_specs=[
            pl.BlockSpec((tm, Hp), lambda i: (i, 0)),
            pl.BlockSpec((Hp, G), lambda i: (0, 0)),
            pl.BlockSpec((1, G), lambda i: (0, 0)),
        ],
        out_specs=pl.BlockSpec((tm, G), lambda i: (i, 0)),
        compiler_params=pltpu.CompilerParams(
            dimension_semantics=("parallel",),
            vmem_limit_bytes=vmem),
    )(x, wi_cat, bi_cat)
    return out[:R]


# ----------------------------------------------------------------------------
# Kernel 2: sequential GRU recurrence, time-chunked.
#   grid = (batch_tiles [parallel], time_chunks [arbitrary]); each grid step
#   runs Ts fully-unrolled GRU steps; h carried in VMEM scratch (f32).
# ----------------------------------------------------------------------------
def _gru_recurrence_kernel(gi_ref, h0_ref, wh_ref, bhn_ref, hid_ref, h_scr):
    t = pl.program_id(1)

    @pl.when(t == 0)
    def _():
        h_scr[...] = h0_ref[...]

    bt, hp = h_scr.shape
    wh = wh_ref[...]                                      # (Hp, 3Hp) f32, resident
    bhn = jnp.broadcast_to(bhn_ref[...], (bt, hp))        # hoisted broadcast

    # Fully unrolled chunk of Ts sequential GRU steps (Ts is a static block dim).
    for s in range(gi_ref.shape[0]):
        h = h_scr[...]                                    # (bt, Hp) f32 carry
        gh = jnp.dot(h, wh, preferred_element_type=jnp.float32)     # f32 h-path
        gi = gi_ref[s].astype(jnp.float32)                # (bt, 3Hp) precomputed
        # PyTorch nn.GRUCell (b_ir+b_hr / b_iz+b_hz / b_in already folded into gi;
        # b_hn stays on the h path inside r * (...)):
        r = jax.nn.sigmoid(gi[:, :hp] + gh[:, :hp])
        z = jax.nn.sigmoid(gi[:, hp:2 * hp] + gh[:, hp:2 * hp])
        n = jnp.tanh(gi[:, 2 * hp:] + r * (gh[:, 2 * hp:] + bhn))
        h_new = n + z * (h - n)                           # == (1-z)*n + z*h
        h_scr[...] = h_new
        hid_ref[s] = h_new.astype(hid_ref.dtype)


# ----------------------------------------------------------------------------
# Kernel 3: batched output projection   logits = H @ W_out + b_out (weight-stationary)
# ----------------------------------------------------------------------------
def _projection_kernel(h_ref, w_ref, b_ref, o_ref):
    o_ref[...] = (
        jnp.dot(h_ref[...], w_ref[...], preferred_element_type=jnp.float32)
        + b_ref[...]
    )


# ----------------------------------------------------------------------------
# Wrapper (matches RNNDecoder.forward semantics)
# ----------------------------------------------------------------------------
@jax.jit
def rnn_decoder_forward(params, inputs, annotations, hidden_init):
    """inputs: (B, S) int32 token ids; hidden_init: (B, H) float32.

    Returns (output, None) with output: (B, S, V) float32 un-normalized scores.
    `annotations` is unused (interface parity with AttentionDecoder).
    """
    del annotations  # unused, as in the PyTorch module

    B, S = inputs.shape
    H = hidden_init.shape[1]
    V = params["w_out"].shape[0]

    B_p = _round_up(B, 8)
    H_p = _round_up(H, 128)
    V_p = _round_up(V, 128)

    # ---------------- parameter prep (x @ W form, padded, fused gates) ----------
    w_ih, w_hh = params["w_ih"], params["w_hh"]   # (3H, H), gate order [r | z | n]
    b_ih, b_hh = params["b_ih"], params["b_hh"]   # (3H,)

    def gate(w, k):
        return w[k * H:(k + 1) * H]

    wi_cat = jnp.concatenate(
        [_pad_to(gate(w_ih, k).T, (H_p, H_p)) for k in range(3)], axis=1
    ).astype(jnp.bfloat16)                                       # (Hp, 3Hp)
    # h-path weights stay f32: the recurrent matmul's rounding would compound.
    wh_cat = jnp.concatenate(
        [_pad_to(gate(w_hh, k).T, (H_p, H_p)) for k in range(3)], axis=1
    ).astype(jnp.float32)                                        # (Hp, 3Hp)

    b_r = b_ih[0:H] + b_hh[0:H]
    b_z = b_ih[H:2 * H] + b_hh[H:2 * H]
    b_in = b_ih[2 * H:3 * H]
    b_hn = b_hh[2 * H:3 * H]
    bi_cat = jnp.concatenate(
        [_pad_to(b_r, (H_p,)), _pad_to(b_z, (H_p,)), _pad_to(b_in, (H_p,))])[None, :]
    bhn = _pad_to(b_hn, (H_p,))[None, :]

    w_out = _pad_to(params["w_out"].T, (H_p, V_p)).astype(jnp.bfloat16)   # (Hp, Vp)
    b_out = _pad_to(params["b_out"], (V_p,))[None, :]                     # (1, Vp)

    emb = _pad_to(params["emb"], (V, H_p))

    # ---------------- input-path gates GI: (S, Bp, 3Hp) bf16, seq-major ----------
    M = S * B_p
    if V_p < M:
        # Small-vocab fast path: one tiny (V, Hp) x (Hp, 3Hp) matmul, then a row
        # gather by token id replaces the per-token input-path matmul entirely.
        gate_table = _row_matmul_gates(emb.astype(jnp.bfloat16), wi_cat, bi_cat)
        inputs_p = _pad_to(inputs, (B_p, S))
        gi = jnp.take(gate_table, inputs_p.T, axis=0)            # (S, Bp, 3Hp)
    else:
        embed_sbh = jnp.take(emb, inputs.T, axis=0)              # (S, B, Hp)
        embed_sbh = _pad_to(embed_sbh, (S, B_p, H_p)).astype(jnp.bfloat16)
        gi_flat = _row_matmul_gates(embed_sbh.reshape(M, H_p), wi_cat, bi_cat)
        gi = gi_flat.reshape(S, B_p, 3 * H_p)

    # ---------------- kernel 2: chunked sequential recurrence --------------------
    # Batch tile: as large as possible (<= 256 rows) so the Wh weight push is
    # amortized across the whole batch; multiple tiles only for large B.
    bt = 8
    for cand in range(min(B_p, 256), 0, -8):
        if B_p % cand == 0:
            bt = cand
            break
    n_bt = B_p // bt

    # Time-chunk size: amortize per-grid-step overhead, bounded by a VMEM budget
    # so the (Ts, bt, 3Hp) GI block fits alongside the resident Wh weight.
    budget = 24 * 1024 * 1024
    fixed = 2 * (H_p * 3 * H_p * 4) + 3 * (bt * H_p * 4)         # Wh (dbl-buf) + h0/scratch
    per_step = 2 * bt * (3 * H_p + H_p) * 2                      # gi+hid blocks, dbl-buf, bf16
    ts_cap = max(1, (budget - fixed) // per_step) if budget > fixed else 1
    Ts = int(max(1, min(16, S, ts_cap)))
    S_p = _round_up(S, Ts)
    n_ts = S_p // Ts

    gi = _pad_to(gi, (S_p, B_p, 3 * H_p))
    h0 = _pad_to(hidden_init, (B_p, H_p)).astype(jnp.float32)

    vmem2 = _vmem_limit(
        [Ts * bt * 3 * H_p * 2, bt * H_p * 4, H_p * 3 * H_p * 4, H_p * 4,
         Ts * bt * H_p * 2],
        scratch_bytes=bt * H_p * 4)

    hid = pl.pallas_call(
        _gru_recurrence_kernel,
        out_shape=jax.ShapeDtypeStruct((S_p, B_p, H_p), jnp.bfloat16),
        grid=(n_bt, n_ts),
        in_specs=[
            pl.BlockSpec((Ts, bt, 3 * H_p), lambda b, t: (t, b, 0)),  # GI chunk
            pl.BlockSpec((bt, H_p), lambda b, t: (b, 0)),             # h0
            pl.BlockSpec((H_p, 3 * H_p), lambda b, t: (0, 0)),        # Wh (resident)
            pl.BlockSpec((1, H_p), lambda b, t: (0, 0)),              # b_hn
        ],
        out_specs=pl.BlockSpec((Ts, bt, H_p), lambda b, t: (t, b, 0)),
        scratch_shapes=[pltpu.VMEM((bt, H_p), jnp.float32)],
        compiler_params=pltpu.CompilerParams(
            dimension_semantics=("parallel", "arbitrary"),
            vmem_limit_bytes=vmem2),
    )(gi, h0, wh_cat, bhn)

    # Layout fix-up on the SMALL hiddens tensor so the big logits tensor is written
    # directly in (B, S, V) order and never transposed.
    hid_bsh = hid[:S].transpose(1, 0, 2).reshape(B_p * S, H_p)

    # ---------------- kernel 3: weight-stationary output projection --------------
    M3 = B_p * S
    tm3 = min(512, M3)
    M3_p = _round_up(M3, tm3)
    hid_bsh = _pad_to(hid_bsh, (M3_p, H_p))
    tv = 128
    for cand in (2048, 1024, 512, 256, 128):
        if V_p % cand == 0:
            tv = cand
            break
    vmem3 = _vmem_limit([tm3 * H_p * 2, H_p * tv * 2, tv * 4, tm3 * tv * 4])

    logits = pl.pallas_call(
        _projection_kernel,
        out_shape=jax.ShapeDtypeStruct((M3_p, V_p), jnp.float32),
        # V tiles on the OUTER axis, row tiles innermost: each (Hp, tv) slab of
        # W_out stays resident in VMEM while every row tile streams past it, so
        # W_out is read from HBM exactly once.
        grid=(V_p // tv, M3_p // tm3),
        in_specs=[
            pl.BlockSpec((tm3, H_p), lambda j, i: (i, 0)),
            pl.BlockSpec((H_p, tv), lambda j, i: (0, j)),
            pl.BlockSpec((1, tv), lambda j, i: (0, j)),
        ],
        out_specs=pl.BlockSpec((tm3, tv), lambda j, i: (i, j)),
        compiler_params=pltpu.CompilerParams(
            dimension_semantics=("parallel", "parallel"),
            vmem_limit_bytes=vmem3),
    )(hid_bsh, w_out, b_out)

    output = logits[:M3].reshape(B_p, S, V_p)[:B, :, :V]
    return output, None


# ----------------------------------------------------------------------------
# Pure-JAX f32 reference (PyTorch nn.GRUCell semantics), for correctness check
# ----------------------------------------------------------------------------
def _reference_forward(params, inputs, hidden_init):
    B, S = inputs.shape
    H = hidden_init.shape[1]
    embed = params["emb"][inputs]                 # (B, S, H)
    w_ih, w_hh = params["w_ih"], params["w_hh"]
    b_ih, b_hh = params["b_ih"], params["b_hh"]

    def gru_cell(x, h):
        gi = x @ w_ih.T + b_ih
        gh = h @ w_hh.T + b_hh
        r = jax.nn.sigmoid(gi[:, :H] + gh[:, :H])
        z = jax.nn.sigmoid(gi[:, H:2 * H] + gh[:, H:2 * H])
        n = jnp.tanh(gi[:, 2 * H:] + r * gh[:, 2 * H:])
        return (1.0 - z) * n + z * h

    def step(h, x_t):
        h_new = gru_cell(x_t, h)
        return h_new, h_new

    _, hiddens = lax.scan(step, hidden_init, jnp.transpose(embed, (1, 0, 2)))
    hiddens = jnp.transpose(hiddens, (1, 0, 2))   # (B, S, H)
    return hiddens @ params["w_out"].T + params["b_out"]


# ----------------------------------------------------------------------------
# Main
# ----------------------------------------------------------------------------
def _init_params(key, vocab_size, hidden_size):
    ks = jax.random.split(key, 8)
    s = 1.0 / jnp.sqrt(hidden_size)
    return {
        "emb":   jax.random.normal(ks[0], (vocab_size, hidden_size), jnp.float32),
        "w_ih":  jax.random.uniform(ks[1], (3 * hidden_size, hidden_size), jnp.float32, -s, s),
        "w_hh":  jax.random.uniform(ks[2], (3 * hidden_size, hidden_size), jnp.float32, -s, s),
        "b_ih":  jax.random.uniform(ks[3], (3 * hidden_size,), jnp.float32, -s, s),
        "b_hh":  jax.random.uniform(ks[4], (3 * hidden_size,), jnp.float32, -s, s),
        "w_out": jax.random.uniform(ks[5], (vocab_size, hidden_size), jnp.float32, -s, s),
        "b_out": jax.random.uniform(ks[6], (vocab_size,), jnp.float32, -s, s),
    }


def _run_and_check(vocab_size, hidden_size, batch_size, seq_len):
    key = jax.random.PRNGKey(0)
    k_param, k_tok, k_hid = jax.random.split(key, 3)

    params = _init_params(k_param, vocab_size, hidden_size)
    inputs = jax.random.randint(k_tok, (batch_size, seq_len), 0, vocab_size, jnp.int32)
    hidden_init = jax.random.normal(k_hid, (batch_size, hidden_size), jnp.float32)
    annotations = jnp.zeros((batch_size, seq_len, hidden_size), jnp.float32)  # unused

    output, none_out = rnn_decoder_forward(params, inputs, annotations, hidden_init)
    output = jax.block_until_ready(output)

    assert output.shape == (batch_size, seq_len, vocab_size)
    assert none_out is None
    assert bool(jnp.all(jnp.isfinite(output)))

    ref = jax.block_until_ready(_reference_forward(params, inputs, hidden_init))
    # bf16 MXU operands on the one-shot matmuls with f32 accumulation.
    assert jnp.allclose(output, ref, atol=5e-2, rtol=5e-2), "mismatch vs JAX reference"


if __name__ == "__main__":
    # Primary small config (per-token input-path matmul, single time chunk).
    _run_and_check(vocab_size=64, hidden_size=32, batch_size=2, seq_len=8)
    # Second config: small vocab (gate-table fast path) + multiple time chunks
    # (validates the h carry across the chunked time grid axis).
    _run_and_check(vocab_size=16, hidden_size=32, batch_size=4, seq_len=32)
    print("KERNEL_OK")
</pallas_src>

<mosaic_0001>
module attributes {stable_mosaic.version = 11 : i64} {
  func.func @_gate_input_kernel(%arg0: i32, %arg1: memref<64x128xbf16, #tpu.memory_space<vmem>>, %arg2: memref<128x384xbf16, #tpu.memory_space<vmem>>, %arg3: memref<1x384xf32, #tpu.memory_space<vmem>>, %arg4: memref<64x384xbf16, #tpu.memory_space<vmem>>) attributes {dimension_semantics = [#tpu.dimension_semantics<parallel>], iteration_bounds = array<i64: 1>, scalar_prefetch = 0 : i64, scratch_operands = 0 : i64, tpu.core_type = #tpu.core_type<tc>, window_params = [{transform_indices = @transform_0, window_bounds = array<i64: 64, 128>}, {pipeline_mode = #tpu.pipeline_mode<synchronous>, transform_indices = @transform_1, window_bounds = array<i64: 128, 384>}, {pipeline_mode = #tpu.pipeline_mode<synchronous>, transform_indices = @transform_2, window_bounds = array<i64: 1, 384>}, {transform_indices = @transform_3, window_bounds = array<i64: 64, 384>}]} {
    %c0 = arith.constant 0 : index
    %c0_0 = arith.constant 0 : index
    %0 = vector.load %arg1[%c0, %c0_0] : memref<64x128xbf16, #tpu.memory_space<vmem>>, vector<64x128xbf16>
    %c0_1 = arith.constant 0 : index
    %c0_2 = arith.constant 0 : index
    %1 = vector.load %arg2[%c0_1, %c0_2] : memref<128x384xbf16, #tpu.memory_space<vmem>>, vector<128x384xbf16>
    %cst = arith.constant dense<0.000000e+00> : vector<64x384xf32>
    %2 = tpu.matmul %0, %1, %cst {dimension_numbers = #tpu.dot_dimension_numbers<[1], [0], [0], [1], [0, 0, 1, 1], [], []>} : vector<64x128xbf16>, vector<128x384xbf16>, vector<64x384xf32> -> vector<64x384xf32>
    %c0_3 = arith.constant 0 : index
    %c0_4 = arith.constant 0 : index
    %3 = vector.load %arg3[%c0_3, %c0_4] : memref<1x384xf32, #tpu.memory_space<vmem>>, vector<1x384xf32>
    %4 = vector.broadcast %3 : vector<1x384xf32> to vector<64x384xf32>
    %5 = arith.addf %2, %4 : vector<64x384xf32>
    %6 = arith.truncf %5 : vector<64x384xf32> to vector<64x384xbf16>
    %c0_5 = arith.constant 0 : index
    %c0_6 = arith.constant 0 : index
    %7 = vector.load %arg4[%c0_5, %c0_6] : memref<64x384xbf16, #tpu.memory_space<vmem>>, vector<64x384xbf16>
    tpu.vector_store %arg4[%c0_5, %c0_6], %6 {strides = array<i32>} : memref<64x384xbf16, #tpu.memory_space<vmem>>, vector<64x384xbf16>,
    return
  }
  func.func @transform_0(%arg0: i32) -> (i32, i32) {
    %c0_i32 = arith.constant 0 : i32
    %c0_i32_0 = arith.constant 0 : i32
    return %arg0, %c0_i32 : i32, i32
  }
  func.func @transform_1(%arg0: i32) -> (i32, i32) {
    %c0_i32 = arith.constant 0 : i32
    %c0_i32_0 = arith.constant 0 : i32
    %c0_i32_1 = arith.constant 0 : i32
    return %c0_i32, %c0_i32_0 : i32, i32
  }
  func.func @transform_2(%arg0: i32) -> (i32, i32) {
    %c0_i32 = arith.constant 0 : i32
    %c0_i32_0 = arith.constant 0 : i32
    %c0_i32_1 = arith.constant 0 : i32
    return %c0_i32, %c0_i32_0 : i32, i32
  }
  func.func @transform_3(%arg0: i32) -> (i32, i32) {
    %c0_i32 = arith.constant 0 : i32
    %c0_i32_0 = arith.constant 0 : i32
    return %arg0, %c0_i32 : i32, i32
  }
}

module attributes {stable_mosaic.version = 11 : i64} {
  func.func @_projection_kernel(%arg0: i32, %arg1: i32, %arg2: memref<64x128xbf16, #tpu.memory_space<vmem>>, %arg3: memref<128x128xbf16, #tpu.memory_space<vmem>>, %arg4: memref<1x128xf32, #tpu.memory_space<vmem>>, %arg5: memref<64x128xf32, #tpu.memory_space<vmem>>) attributes {dimension_semantics = [#tpu.dimension_semantics<parallel>, #tpu.dimension_semantics<parallel>], iteration_bounds = array<i64: 1, 1>, scalar_prefetch = 0 : i64, scratch_operands = 0 : i64, tpu.core_type = #tpu.core_type<tc>, window_params = [{transform_indices = @transform_0, window_bounds = array<i64: 64, 128>}, {transform_indices = @transform_1, window_bounds = array<i64: 128, 128>}, {transform_indices = @transform_2, window_bounds = array<i64: 1, 128>}, {transform_indices = @transform_3, window_bounds = array<i64: 64, 128>}]} {
    %c0 = arith.constant 0 : index
    %c0_0 = arith.constant 0 : index
    %0 = vector.load %arg2[%c0, %c0_0] : memref<64x128xbf16, #tpu.memory_space<vmem>>, vector<64x128xbf16>
    %c0_1 = arith.constant 0 : index
    %c0_2 = arith.constant 0 : index
    %1 = vector.load %arg3[%c0_1, %c0_2] : memref<128x128xbf16, #tpu.memory_space<vmem>>, vector<128x128xbf16>
    %cst = arith.constant dense<0.000000e+00> : vector<64x128xf32>
    %2 = tpu.matmul %0, %1, %cst {dimension_numbers = #tpu.dot_dimension_numbers<[1], [0], [0], [1], [0, 0, 1, 1], [], []>} : vector<64x128xbf16>, vector<128x128xbf16>, vector<64x128xf32> -> vector<64x128xf32>
    %c0_3 = arith.constant 0 : index
    %c0_4 = arith.constant 0 : index
    %3 = vector.load %arg4[%c0_3, %c0_4] : memref<1x128xf32, #tpu.memory_space<vmem>>, vector<1x128xf32>
    %4 = vector.broadcast %3 : vector<1x128xf32> to vector<64x128xf32>
    %5 = arith.addf %2, %4 : vector<64x128xf32>
    %c0_5 = arith.constant 0 : index
    %c0_6 = arith.constant 0 : index
    %6 = vector.load %arg5[%c0_5, %c0_6] : memref<64x128xf32, #tpu.memory_space<vmem>>, vector<64x128xf32>
    tpu.vector_store %arg5[%c0_5, %c0_6], %5 {strides = array<i32>} : memref<64x128xf32, #tpu.memory_space<vmem>>, vector<64x128xf32>,
    return
  }
  func.func @transform_0(%arg0: i32, %arg1: i32) -> (i32, i32) {
    %c0_i32 = arith.constant 0 : i32
    %c0_i32_0 = arith.constant 0 : i32
    return %arg1, %c0_i32 : i32, i32
  }
  func.func @transform_1(%arg0: i32, %arg1: i32) -> (i32, i32) {
    %c0_i32 = arith.constant 0 : i32
    %c0_i32_0 = arith.constant 0 : i32
    return %c0_i32, %arg0 : i32, i32
  }
  func.func @transform_2(%arg0: i32, %arg1: i32) -> (i32, i32) {
    %c0_i32 = arith.constant 0 : i32
    %c0_i32_0 = arith.constant 0 : i32
    return %c0_i32, %arg0 : i32, i32
  }
  func.func @transform_3(%arg0: i32, %arg1: i32) -> (i32, i32) {
    %c0_i32 = arith.constant 0 : i32
    return %arg1, %arg0 : i32, i32
  }
}

module attributes {stable_mosaic.version = 11 : i64} {
  func.func @_gru_recurrence_kernel(%arg0: i32, %arg1: i32, %arg2: memref<8x8x384xbf16, #tpu.memory_space<vmem>>, %arg3: memref<8x128xf32, #tpu.memory_space<vmem>>, %arg4: memref<128x384xf32, #tpu.memory_space<vmem>>, %arg5: memref<1x128xf32, #tpu.memory_space<vmem>>, %arg6: memref<8x8x128xbf16, #tpu.memory_space<vmem>>, %arg7: memref<8x128xf32, #tpu.memory_space<vmem>>) attributes {dimension_semantics = [#tpu.dimension_semantics<parallel>, #tpu.dimension_semantics<arbitrary>], iteration_bounds = array<i64: 1, 1>, scalar_prefetch = 0 : i64, scratch_operands = 1 : i64, tpu.core_type = #tpu.core_type<tc>, window_params = [{transform_indices = @transform_0, window_bounds = array<i64: 8, 8, 384>}, {transform_indices = @transform_1, window_bounds = array<i64: 8, 128>}, {pipeline_mode = #tpu.pipeline_mode<synchronous>, transform_indices = @transform_2, window_bounds = array<i64: 128, 384>}, {pipeline_mode = #tpu.pipeline_mode<synchronous>, transform_indices = @transform_3, window_bounds = array<i64: 1, 128>}, {transform_indices = @transform_4, window_bounds = array<i64: 8, 8, 128>}]} {
    %c0_i32 = arith.constant 0 : i32
    %0 = arith.cmpi eq, %arg1, %c0_i32 : i32
    %1 = arith.extui %0 : i1 to i32
    %c0_i32_0 = arith.constant 0 : i32
    %2 = arith.cmpi ne, %1, %c0_i32_0 : i32
    scf.if %2 {
      %c0_100 = arith.constant 0 : index
      %c0_101 = arith.constant 0 : index
      %287 = vector.load %arg3[%c0_100, %c0_101] : memref<8x128xf32, #tpu.memory_space<vmem>>, vector<8x128xf32>
      %c0_102 = arith.constant 0 : index
      %c0_103 = arith.constant 0 : index
      %288 = vector.load %arg7[%c0_102, %c0_103] : memref<8x128xf32, #tpu.memory_space<vmem>>, vector<8x128xf32>
      tpu.vector_store %arg7[%c0_102, %c0_103], %287 {strides = array<i32>} : memref<8x128xf32, #tpu.memory_space<vmem>>, vector<8x128xf32>,
    } else {
    }
    %c0 = arith.constant 0 : index
    %c0_1 = arith.constant 0 : index
    %3 = vector.load %arg4[%c0, %c0_1] : memref<128x384xf32, #tpu.memory_space<vmem>>, vector<128x384xf32>
    %c0_2 = arith.constant 0 : index
    %c0_3 = arith.constant 0 : index
    %4 = vector.load %arg5[%c0_2, %c0_3] : memref<1x128xf32, #tpu.memory_space<vmem>>, vector<1x128xf32>
    %5 = vector.shape_cast %4 : vector<1x128xf32> to vector<1x128xf32>
    %6 = vector.broadcast %5 : vector<1x128xf32> to vector<8x128xf32>
    %c0_4 = arith.constant 0 : index
    %c0_5 = arith.constant 0 : index
    %7 = vector.load %arg7[%c0_4, %c0_5] : memref<8x128xf32, #tpu.memory_space<vmem>>, vector<8x128xf32>
    %cst = arith.constant dense<0.000000e+00> : vector<8x384xf32>
    %8 = tpu.matmul %7, %3, %cst {dimension_numbers = #tpu.dot_dimension_numbers<[1], [0], [0], [1], [0, 0, 1, 1], [], []>} : vector<8x128xf32>, vector<128x384xf32>, vector<8x384xf32> -> vector<8x384xf32>
    %c0_6 = arith.constant 0 : index
    %c0_7 = arith.constant 0 : index
    %c0_8 = arith.constant 0 : index
    %9 = vector.load %arg2[%c0_6, %c0_7, %c0_8] : memref<8x8x384xbf16, #tpu.memory_space<vmem>>, vector<1x8x384xbf16>
    %10 = vector.shape_cast %9 : vector<1x8x384xbf16> to vector<8x384xbf16>
    %11 = arith.extf %10 : vector<8x384xbf16> to vector<8x384xf32>
    %12 = vector.extract_strided_slice %11 {offsets = [0, 0], sizes = [8, 128], strides = [1, 1]} : vector<8x384xf32> to vector<8x128xf32>
    %13 = vector.extract_strided_slice %8 {offsets = [0, 0], sizes = [8, 128], strides = [1, 1]} : vector<8x384xf32> to vector<8x128xf32>
    %14 = arith.addf %12, %13 : vector<8x128xf32>
    %15 = arith.negf %14 : vector<8x128xf32>
    %16 = math.exp %15 : vector<8x128xf32>
    %cst_9 = arith.constant 1.000000e+00 : f32
    %17 = vector.broadcast %cst_9 : f32 to vector<8x128xf32>
    %18 = arith.addf %17, %16 : vector<8x128xf32>
    %19 = arith.divf %17, %18 : vector<8x128xf32>
    %20 = vector.extract_strided_slice %11 {offsets = [0, 128], sizes = [8, 128], strides = [1, 1]} : vector<8x384xf32> to vector<8x128xf32>
    %21 = vector.extract_strided_slice %8 {offsets = [0, 128], sizes = [8, 128], strides = [1, 1]} : vector<8x384xf32> to vector<8x128xf32>
    %22 = arith.addf %20, %21 : vector<8x128xf32>
    %23 = arith.negf %22 : vector<8x128xf32>
    %24 = math.exp %23 : vector<8x128xf32>
    %cst_10 = arith.constant 1.000000e+00 : f32
    %25 = vector.broadcast %cst_10 : f32 to vector<8x128xf32>
    %26 = arith.addf %25, %24 : vector<8x128xf32>
    %27 = arith.divf %25, %26 : vector<8x128xf32>
    %28 = vector.extract_strided_slice %11 {offsets = [0, 256], sizes = [8, 128], strides = [1, 1]} : vector<8x384xf32> to vector<8x128xf32>
    %29 = vector.extract_strided_slice %8 {offsets = [0, 256], sizes = [8, 128], strides = [1, 1]} : vector<8x384xf32> to vector<8x128xf32>
    %30 = arith.addf %29, %6 : vector<8x128xf32>
    %31 = arith.mulf %19, %30 : vector<8x128xf32>
    %32 = arith.addf %28, %31 : vector<8x128xf32>
    %33 = math.tanh %32 : vector<8x128xf32>
    %34 = arith.subf %7, %33 : vector<8x128xf32>
    %35 = arith.mulf %27, %34 : vector<8x128xf32>
    %36 = arith.addf %33, %35 : vector<8x128xf32>
    %c0_11 = arith.constant 0 : index
    %c0_12 = arith.constant 0 : index
    %37 = vector.load %arg7[%c0_11, %c0_12] : memref<8x128xf32, #tpu.memory_space<vmem>>, vector<8x128xf32>
    tpu.vector_store %arg7[%c0_11, %c0_12], %36 {strides = array<i32>} : memref<8x128xf32, #tpu.memory_space<vmem>>, vector<8x128xf32>,
    %38 = arith.truncf %36 : vector<8x128xf32> to vector<8x128xbf16>
    %c0_13 = arith.constant 0 : index
    %c0_14 = arith.constant 0 : index
    %c0_15 = arith.constant 0 : index
    %39 = vector.load %arg6[%c0_13, %c0_14, %c0_15] : memref<8x8x128xbf16, #tpu.memory_space<vmem>>, vector<1x8x128xbf16>
    %40 = vector.shape_cast %39 : vector<1x8x128xbf16> to vector<8x128xbf16>
    %41 = vector.shape_cast %38 : vector<8x128xbf16> to vector<1x8x128xbf16>
    tpu.vector_store %arg6[%c0_13, %c0_14, %c0_15], %41 {strides = array<i32>} : memref<8x8x128xbf16, #tpu.memory_space<vmem>>, vector<1x8x128xbf16>,
    %c0_16 = arith.constant 0 : index
    %c0_17 = arith.constant 0 : index
    %42 = vector.load %arg7[%c0_16, %c0_17] : memref<8x128xf32, #tpu.memory_space<vmem>>, vector<8x128xf32>
    %cst_18 = arith.constant dense<0.000000e+00> : vector<8x384xf32>
    %43 = tpu.matmul %42, %3, %cst_18 {dimension_numbers = #tpu.dot_dimension_numbers<[1], [0], [0], [1], [0, 0, 1, 1], [], []>} : vector<8x128xf32>, vector<128x384xf32>, vector<8x384xf32> -> vector<8x384xf32>
    %c1 = arith.constant 1 : index
    %c0_19 = arith.constant 0 : index
    %c0_20 = arith.constant 0 : index
    %44 = vector.load %arg2[%c1, %c0_19, %c0_20] : memref<8x8x384xbf16, #tpu.memory_space<vmem>>, vector<1x8x384xbf16>
    %45 = vector.shape_cast %44 : vector<1x8x384xbf16> to vector<8x384xbf16>
    %46 = arith.extf %45 : vector<8x384xbf16> to vector<8x384xf32>
    %47 = vector.extract_strided_slice %46 {offsets = [0, 0], sizes = [8, 128], strides = [1, 1]} : vector<8x384xf32> to vector<8x128xf32>
    %48 = vector.extract_strided_slice %43 {offsets = [0, 0], sizes = [8, 128], strides = [1, 1]} : vector<8x384xf32> to vector<8x128xf32>
    %49 = arith.addf %47, %48 : vector<8x128xf32>
    %50 = arith.negf %49 : vector<8x128xf32>
    %51 = math.exp %50 : vector<8x128xf32>
    %cst_21 = arith.constant 1.000000e+00 : f32
    %52 = vector.broadcast %cst_21 : f32 to vector<8x128xf32>
    %53 = arith.addf %52, %51 : vector<8x128xf32>
    %54 = arith.divf %52, %53 : vector<8x128xf32>
    %55 = vector.extract_strided_slice %46 {offsets = [0, 128], sizes = [8, 128], strides = [1, 1]} : vector<8x384xf32> to vector<8x128xf32>
    %56 = vector.extract_strided_slice %43 {offsets = [0, 128], sizes = [8, 128], strides = [1, 1]} : vector<8x384xf32> to vector<8x128xf32>
    %57 = arith.addf %55, %56 : vector<8x128xf32>
    %58 = arith.negf %57 : vector<8x128xf32>
    %59 = math.exp %58 : vector<8x128xf32>
    %cst_22 = arith.constant 1.000000e+00 : f32
    %60 = vector.broadcast %cst_22 : f32 to vector<8x128xf32>
    %61 = arith.addf %60, %59 : vector<8x128xf32>
    %62 = arith.divf %60, %61 : vector<8x128xf32>
    %63 = vector.extract_strided_slice %46 {offsets = [0, 256], sizes = [8, 128], strides = [1, 1]} : vector<8x384xf32> to vector<8x128xf32>
    %64 = vector.extract_strided_slice %43 {offsets = [0, 256], sizes = [8, 128], strides = [1, 1]} : vector<8x384xf32> to vector<8x128xf32>
    %65 = arith.addf %64, %6 : vector<8x128xf32>
    %66 = arith.mulf %54, %65 : vector<8x128xf32>
    %67 = arith.addf %63, %66 : vector<8x128xf32>
    %68 = math.tanh %67 : vector<8x128xf32>
    %69 = arith.subf %42, %68 : vector<8x128xf32>
    %70 = arith.mulf %62, %69 : vector<8x128xf32>
    %71 = arith.addf %68, %70 : vector<8x128xf32>
    %c0_23 = arith.constant 0 : index
    %c0_24 = arith.constant 0 : index
    %72 = vector.load %arg7[%c0_23, %c0_24] : memref<8x128xf32, #tpu.memory_space<vmem>>, vector<8x128xf32>
    tpu.vector_store %arg7[%c0_23, %c0_24], %71 {strides = array<i32>} : memref<8x128xf32, #tpu.memory_space<vmem>>, vector<8x128xf32>,
    %73 = arith.truncf %71 : vector<8x128xf32> to vector<8x128xbf16>
    %c1_25 = arith.constant 1 : index
    %c0_26 = arith.constant 0 : index
    %c0_27 = arith.constant 0 : index
    %74 = vector.load %arg6[%c1_25, %c0_26, %c0_27] : memref<8x8x128xbf16, #tpu.memory_space<vmem>>, vector<1x8x128xbf16>
    %75 = vector.shape_cast %74 : vector<1x8x128xbf16> to vector<8x128xbf16>
    %76 = vector.shape_cast %73 : vector<8x128xbf16> to vector<1x8x128xbf16>
    tpu.vector_store %arg6[%c1_25, %c0_26, %c0_27], %76 {strides = array<i32>} : memref<8x8x128xbf16, #tpu.memory_space<vmem>>, vector<1x8x128xbf16>,
    %c0_28 = arith.constant 0 : index
    %c0_29 = arith.constant 0 : index
    %77 = vector.load %arg7[%c0_28, %c0_29] : memref<8x128xf32, #tpu.memory_space<vmem>>, vector<8x128xf32>
    %cst_30 = arith.constant dense<0.000000e+00> : vector<8x384xf32>
    %78 = tpu.matmul %77, %3, %cst_30 {dimension_numbers = #tpu.dot_dimension_numbers<[1], [0], [0], [1], [0, 0, 1, 1], [], []>} : vector<8x128xf32>, vector<128x384xf32>, vector<8x384xf32> -> vector<8x384xf32>
    %c2 = arith.constant 2 : index
    %c0_31 = arith.constant 0 : index
    %c0_32 = arith.constant 0 : index
    %79 = vector.load %arg2[%c2, %c0_31, %c0_32] : memref<8x8x384xbf16, #tpu.memory_space<vmem>>, vector<1x8x384xbf16>
    %80 = vector.shape_cast %79 : vector<1x8x384xbf16> to vector<8x384xbf16>
    %81 = arith.extf %80 : vector<8x384xbf16> to vector<8x384xf32>
    %82 = vector.extract_strided_slice %81 {offsets = [0, 0], sizes = [8, 128], strides = [1, 1]} : vector<8x384xf32> to vector<8x128xf32>
    %83 = vector.extract_strided_slice %78 {offsets = [0, 0], sizes = [8, 128], strides = [1, 1]} : vector<8x384xf32> to vector<8x128xf32>
    %84 = arith.addf %82, %83 : vector<8x128xf32>
    %85 = arith.negf %84 : vector<8x128xf32>
    %86 = math.exp %85 : vector<8x128xf32>
    %cst_33 = arith.constant 1.000000e+00 : f32
    %87 = vector.broadcast %cst_33 : f32 to vector<8x128xf32>
    %88 = arith.addf %87, %86 : vector<8x128xf32>
    %89 = arith.divf %87, %88 : vector<8x128xf32>
    %90 = vector.extract_strided_slice %81 {offsets = [0, 128], sizes = [8, 128], strides = [1, 1]} : vector<8x384xf32> to vector<8x128xf32>
    %91 = vector.extract_strided_slice %78 {offsets = [0, 128], sizes = [8, 128], strides = [1, 1]} : vector<8x384xf32> to vector<8x128xf32>
    %92 = arith.addf %90, %91 : vector<8x128xf32>
    %93 = arith.negf %92 : vector<8x128xf32>
    %94 = math.exp %93 : vector<8x128xf32>
    %cst_34 = arith.constant 1.000000e+00 : f32
    %95 = vector.broadcast %cst_34 : f32 to vector<8x128xf32>
    %96 = arith.addf %95, %94 : vector<8x128xf32>
    %97 = arith.divf %95, %96 : vector<8x128xf32>
    %98 = vector.extract_strided_slice %81 {offsets = [0, 256], sizes = [8, 128], strides = [1, 1]} : vector<8x384xf32> to vector<8x128xf32>
    %99 = vector.extract_strided_slice %78 {offsets = [0, 256], sizes = [8, 128], strides = [1, 1]} : vector<8x384xf32> to vector<8x128xf32>
    %100 = arith.addf %99, %6 : vector<8x128xf32>
    %101 = arith.mulf %89, %100 : vector<8x128xf32>
    %102 = arith.addf %98, %101 : vector<8x128xf32>
    %103 = math.tanh %102 : vector<8x128xf32>
    %104 = arith.subf %77, %103 : vector<8x128xf32>
    %105 = arith.mulf %97, %104 : vector<8x128xf32>
    %106 = arith.addf %103, %105 : vector<8x128xf32>
    %c0_35 = arith.constant 0 : index
    %c0_36 = arith.constant 0 : index
    %107 = vector.load %arg7[%c0_35, %c0_36] : memref<8x128xf32, #tpu.memory_space<vmem>>, vector<8x128xf32>
    tpu.vector_store %arg7[%c0_35, %c0_36], %106 {strides = array<i32>} : memref<8x128xf32, #tpu.memory_space<vmem>>, vector<8x128xf32>,
    %108 = arith.truncf %106 : vector<8x128xf32> to vector<8x128xbf16>
    %c2_37 = arith.constant 2 : index
    %c0_38 = arith.constant 0 : index
    %c0_39 = arith.constant 0 : index
    %109 = vector.load %arg6[%c2_37, %c0_38, %c0_39] : memref<8x8x128xbf16, #tpu.memory_space<vmem>>, vector<1x8x128xbf16>
    %110 = vector.shape_cast %109 : vector<1x8x128xbf16> to vector<8x128xbf16>
    %111 = vector.shape_cast %108 : vector<8x128xbf16> to vector<1x8x128xbf16>
    tpu.vector_store %arg6[%c2_37, %c0_38, %c0_39], %111 {strides = array<i32>} : memref<8x8x128xbf16, #tpu.memory_space<vmem>>, vector<1x8x128xbf16>,
    %c0_40 = arith.constant 0 : index
    %c0_41 = arith.constant 0 : index
    %112 = vector.load %arg7[%c0_40, %c0_41] : memref<8x128xf32, #tpu.memory_space<vmem>>, vector<8x128xf32>
    %cst_42 = arith.constant dense<0.000000e+00> : vector<8x384xf32>
    %113 = tpu.matmul %112, %3, %cst_42 {dimension_numbers = #tpu.dot_dimension_numbers<[1], [0], [0], [1], [0, 0, 1, 1], [], []>} : vector<8x128xf32>, vector<128x384xf32>, vector<8x384xf32> -> vector<8x384xf32>
    %c3 = arith.constant 3 : index
    %c0_43 = arith.constant 0 : index
    %c0_44 = arith.constant 0 : index
    %114 = vector.load %arg2[%c3, %c0_43, %c0_44] : memref<8x8x384xbf16, #tpu.memory_space<vmem>>, vector<1x8x384xbf16>
    %115 = vector.shape_cast %114 : vector<1x8x384xbf16> to vector<8x384xbf16>
    %116 = arith.extf %115 : vector<8x384xbf16> to vector<8x384xf32>
    %117 = vector.extract_strided_slice %116 {offsets = [0, 0], sizes = [8, 128], strides = [1, 1]} : vector<8x384xf32> to vector<8x128xf32>
    %118 = vector.extract_strided_slice %113 {offsets = [0, 0], sizes = [8, 128], strides = [1, 1]} : vector<8x384xf32> to vector<8x128xf32>
    %119 = arith.addf %117, %118 : vector<8x128xf32>
    %120 = arith.negf %119 : vector<8x128xf32>
    %121 = math.exp %120 : vector<8x128xf32>
    %cst_45 = arith.constant 1.000000e+00 : f32
    %122 = vector.broadcast %cst_45 : f32 to vector<8x128xf32>
    %123 = arith.addf %122, %121 : vector<8x128xf32>
    %124 = arith.divf %122, %123 : vector<8x128xf32>
    %125 = vector.extract_strided_slice %116 {offsets = [0, 128], sizes = [8, 128], strides = [1, 1]} : vector<8x384xf32> to vector<8x128xf32>
    %126 = vector.extract_strided_slice %113 {offsets = [0, 128], sizes = [8, 128], strides = [1, 1]} : vector<8x384xf32> to vector<8x128xf32>
    %127 = arith.addf %125, %126 : vector<8x128xf32>
    %128 = arith.negf %127 : vector<8x128xf32>
    %129 = math.exp %128 : vector<8x128xf32>
    %cst_46 = arith.constant 1.000000e+00 : f32
    %130 = vector.broadcast %cst_46 : f32 to vector<8x128xf32>
    %131 = arith.addf %130, %129 : vector<8x128xf32>
    %132 = arith.divf %130, %131 : vector<8x128xf32>
    %133 = vector.extract_strided_slice %116 {offsets = [0, 256], sizes = [8, 128], strides = [1, 1]} : vector<8x384xf32> to vector<8x128xf32>
    %134 = vector.extract_strided_slice %113 {offsets = [0, 256], sizes = [8, 128], strides = [1, 1]} : vector<8x384xf32> to vector<8x128xf32>
    %135 = arith.addf %134, %6 : vector<8x128xf32>
    %136 = arith.mulf %124, %135 : vector<8x128xf32>
    %137 = arith.addf %133, %136 : vector<8x128xf32>
    %138 = math.tanh %137 : vector<8x128xf32>
    %139 = arith.subf %112, %138 : vector<8x128xf32>
    %140 = arith.mulf %132, %139 : vector<8x128xf32>
    %141 = arith.addf %138, %140 : vector<8x128xf32>
    %c0_47 = arith.constant 0 : index
    %c0_48 = arith.constant 0 : index
    %142 = vector.load %arg7[%c0_47, %c0_48] : memref<8x128xf32, #tpu.memory_space<vmem>>, vector<8x128xf32>
    tpu.vector_store %arg7[%c0_47, %c0_48], %141 {strides = array<i32>} : memref<8x128xf32, #tpu.memory_space<vmem>>, vector<8x128xf32>,
    %143 = arith.truncf %141 : vector<8x128xf32> to vector<8x128xbf16>
    %c3_49 = arith.constant 3 : index
    %c0_50 = arith.constant 0 : index
    %c0_51 = arith.constant 0 : index
    %144 = vector.load %arg6[%c3_49, %c0_50, %c0_51] : memref<8x8x128xbf16, #tpu.memory_space<vmem>>, vector<1x8x128xbf16>
    %145 = vector.shape_cast %144 : vector<1x8x128xbf16> to vector<8x128xbf16>
    %146 = vector.shape_cast %143 : vector<8x128xbf16> to vector<1x8x128xbf16>
    tpu.vector_store %arg6[%c3_49, %c0_50, %c0_51], %146 {strides = array<i32>} : memref<8x8x128xbf16, #tpu.memory_space<vmem>>, vector<1x8x128xbf16>,
    %c0_52 = arith.constant 0 : index
    %c0_53 = arith.constant 0 : index
    %147 = vector.load %arg7[%c0_52, %c0_53] : memref<8x128xf32, #tpu.memory_space<vmem>>, vector<8x128xf32>
    %cst_54 = arith.constant dense<0.000000e+00> : vector<8x384xf32>
    %148 = tpu.matmul %147, %3, %cst_54 {dimension_numbers = #tpu.dot_dimension_numbers<[1], [0], [0], [1], [0, 0, 1, 1], [], []>} : vector<8x128xf32>, vector<128x384xf32>, vector<8x384xf32> -> vector<8x384xf32>
    %c4 = arith.constant 4 : index
    %c0_55 = arith.constant 0 : index
    %c0_56 = arith.constant 0 : index
    %149 = vector.load %arg2[%c4, %c0_55, %c0_56] : memref<8x8x384xbf16, #tpu.memory_space<vmem>>, vector<1x8x384xbf16>
    %150 = vector.shape_cast %149 : vector<1x8x384xbf16> to vector<8x384xbf16>
    %151 = arith.extf %150 : vector<8x384xbf16> to vector<8x384xf32>
    %152 = vector.extract_strided_slice %151 {offsets = [0, 0], sizes = [8, 128], strides = [1, 1]} : vector<8x384xf32> to vector<8x128xf32>
    %153 = vector.extract_strided_slice %148 {offsets = [0, 0], sizes = [8, 128], strides = [1, 1]} : vector<8x384xf32> to vector<8x128xf32>
    %154 = arith.addf %152, %153 : vector<8x128xf32>
    %155 = arith.negf %154 : vector<8x128xf32>
    %156 = math.exp %155 : vector<8x128xf32>
    %cst_57 = arith.constant 1.000000e+00 : f32
    %157 = vector.broadcast %cst_57 : f32 to vector<8x128xf32>
    %158 = arith.addf %157, %156 : vector<8x128xf32>
    %159 = arith.divf %157, %158 : vector<8x128xf32>
    %160 = vector.extract_strided_slice %151 {offsets = [0, 128], sizes = [8, 128], strides = [1, 1]} : vector<8x384xf32> to vector<8x128xf32>
    %161 = vector.extract_strided_slice %148 {offsets = [0, 128], sizes = [8, 128], strides = [1, 1]} : vector<8x384xf32> to vector<8x128xf32>
    %162 = arith.addf %160, %161 : vector<8x128xf32>
    %163 = arith.negf %162 : vector<8x128xf32>
    %164 = math.exp %163 : vector<8x128xf32>
    %cst_58 = arith.constant 1.000000e+00 : f32
    %165 = vector.broadcast %cst_58 : f32 to vector<8x128xf32>
    %166 = arith.addf %165, %164 : vector<8x128xf32>
    %167 = arith.divf %165, %166 : vector<8x128xf32>
    %168 = vector.extract_strided_slice %151 {offsets = [0, 256], sizes = [8, 128], strides = [1, 1]} : vector<8x384xf32> to vector<8x128xf32>
    %169 = vector.extract_strided_slice %148 {offsets = [0, 256], sizes = [8, 128], strides = [1, 1]} : vector<8x384xf32> to vector<8x128xf32>
    %170 = arith.addf %169, %6 : vector<8x128xf32>
    %171 = arith.mulf %159, %170 : vector<8x128xf32>
    %172 = arith.addf %168, %171 : vector<8x128xf32>
    %173 = math.tanh %172 : vector<8x128xf32>
    %174 = arith.subf %147, %173 : vector<8x128xf32>
    %175 = arith.mulf %167, %174 : vector<8x128xf32>
    %176 = arith.addf %173, %175 : vector<8x128xf32>
    %c0_59 = arith.constant 0 : index
    %c0_60 = arith.constant 0 : index
    %177 = vector.load %arg7[%c0_59, %c0_60] : memref<8x128xf32, #tpu.memory_space<vmem>>, vector<8x128xf32>
    tpu.vector_store %arg7[%c0_59, %c0_60], %176 {strides = array<i32>} : memref<8x128xf32, #tpu.memory_space<vmem>>, vector<8x128xf32>,
    %178 = arith.truncf %176 : vector<8x128xf32> to vector<8x128xbf16>
    %c4_61 = arith.constant 4 : index
    %c0_62 = arith.constant 0 : index
    %c0_63 = arith.constant 0 : index
    %179 = vector.load %arg6[%c4_61, %c0_62, %c0_63] : memref<8x8x128xbf16, #tpu.memory_space<vmem>>, vector<1x8x128xbf16>
    %180 = vector.shape_cast %179 : vector<1x8x128xbf16> to vector<8x128xbf16>
    %181 = vector.shape_cast %178 : vector<8x128xbf16> to vector<1x8x128xbf16>
    tpu.vector_store %arg6[%c4_61, %c0_62, %c0_63], %181 {strides = array<i32>} : memref<8x8x128xbf16, #tpu.memory_space<vmem>>, vector<1x8x128xbf16>,
    %c0_64 = arith.constant 0 : index
    %c0_65 = arith.constant 0 : index
    %182 = vector.load %arg7[%c0_64, %c0_65] : memref<8x128xf32, #tpu.memory_space<vmem>>, vector<8x128xf32>
    %cst_66 = arith.constant dense<0.000000e+00> : vector<8x384xf32>
    %183 = tpu.matmul %182, %3, %cst_66 {dimension_numbers = #tpu.dot_dimension_numbers<[1], [0], [0], [1], [0, 0, 1, 1], [], []>} : vector<8x128xf32>, vector<128x384xf32>, vector<8x384xf32> -> vector<8x384xf32>
    %c5 = arith.constant 5 : index
    %c0_67 = arith.constant 0 : index
    %c0_68 = arith.constant 0 : index
    %184 = vector.load %arg2[%c5, %c0_67, %c0_68] : memref<8x8x384xbf16, #tpu.memory_space<vmem>>, vector<1x8x384xbf16>
    %185 = vector.shape_cast %184 : vector<1x8x384xbf16> to vector<8x384xbf16>
    %186 = arith.extf %185 : vector<8x384xbf16> to vector<8x384xf32>
    %187 = vector.extract_strided_slice %186 {offsets = [0, 0], sizes = [8, 128], strides = [1, 1]} : vector<8x384xf32> to vector<8x128xf32>
    %188 = vector.extract_strided_slice %183 {offsets = [0, 0], sizes = [8, 128], strides = [1, 1]} : vector<8x384xf32> to vector<8x128xf32>
    %189 = arith.addf %187, %188 : vector<8x128xf32>
    %190 = arith.negf %189 : vector<8x128xf32>
    %191 = math.exp %190 : vector<8x128xf32>
    %cst_69 = arith.constant 1.000000e+00 : f32
    %192 = vector.broadcast %cst_69 : f32 to vector<8x128xf32>
    %193 = arith.addf %192, %191 : vector<8x128xf32>
    %194 = arith.divf %192, %193 : vector<8x128xf32>
    %195 = vector.extract_strided_slice %186 {offsets = [0, 128], sizes = [8, 128], strides = [1, 1]} : vector<8x384xf32> to vector<8x128xf32>
    %196 = vector.extract_strided_slice %183 {offsets = [0, 128], sizes = [8, 128], strides = [1, 1]} : vector<8x384xf32> to vector<8x128xf32>
    %197 = arith.addf %195, %196 : vector<8x128xf32>
    %198 = arith.negf %197 : vector<8x128xf32>
    %199 = math.exp %198 : vector<8x128xf32>
    %cst_70 = arith.constant 1.000000e+00 : f32
    %200 = vector.broadcast %cst_70 : f32 to vector<8x128xf32>
    %201 = arith.addf %200, %199 : vector<8x128xf32>
    %202 = arith.divf %200, %201 : vector<8x128xf32>
    %203 = vector.extract_strided_slice %186 {offsets = [0, 256], sizes = [8, 128], strides = [1, 1]} : vector<8x384xf32> to vector<8x128xf32>
    %204 = vector.extract_strided_slice %183 {offsets = [0, 256], sizes = [8, 128], strides = [1, 1]} : vector<8x384xf32> to vector<8x128xf32>
    %205 = arith.addf %204, %6 : vector<8x128xf32>
    %206 = arith.mulf %194, %205 : vector<8x128xf32>
    %207 = arith.addf %203, %206 : vector<8x128xf32>
    %208 = math.tanh %207 : vector<8x128xf32>
    %209 = arith.subf %182, %208 : vector<8x128xf32>
    %210 = arith.mulf %202, %209 : vector<8x128xf32>
    %211 = arith.addf %208, %210 : vector<8x128xf32>
    %c0_71 = arith.constant 0 : index
    %c0_72 = arith.constant 0 : index
    %212 = vector.load %arg7[%c0_71, %c0_72] : memref<8x128xf32, #tpu.memory_space<vmem>>, vector<8x128xf32>
    tpu.vector_store %arg7[%c0_71, %c0_72], %211 {strides = array<i32>} : memref<8x128xf32, #tpu.memory_space<vmem>>, vector<8x128xf32>,
    %213 = arith.truncf %211 : vector<8x128xf32> to vector<8x128xbf16>
    %c5_73 = arith.constant 5 : index
    %c0_74 = arith.constant 0 : index
    %c0_75 = arith.constant 0 : index
    %214 = vector.load %arg6[%c5_73, %c0_74, %c0_75] : memref<8x8x128xbf16, #tpu.memory_space<vmem>>, vector<1x8x128xbf16>
    %215 = vector.shape_cast %214 : vector<1x8x128xbf16> to vector<8x128xbf16>
    %216 = vector.shape_cast %213 : vector<8x128xbf16> to vector<1x8x128xbf16>
    tpu.vector_store %arg6[%c5_73, %c0_74, %c0_75], %216 {strides = array<i32>} : memref<8x8x128xbf16, #tpu.memory_space<vmem>>, vector<1x8x128xbf16>,
    %c0_76 = arith.constant 0 : index
    %c0_77 = arith.constant 0 : index
    %217 = vector.load %arg7[%c0_76, %c0_77] : memref<8x128xf32, #tpu.memory_space<vmem>>, vector<8x128xf32>
    %cst_78 = arith.constant dense<0.000000e+00> : vector<8x384xf32>
    %218 = tpu.matmul %217, %3, %cst_78 {dimension_numbers = #tpu.dot_dimension_numbers<[1], [0], [0], [1], [0, 0, 1, 1], [], []>} : vector<8x128xf32>, vector<128x384xf32>, vector<8x384xf32> -> vector<8x384xf32>
    %c6 = arith.constant 6 : index
    %c0_79 = arith.constant 0 : index
    %c0_80 = arith.constant 0 : index
    %219 = vector.load %arg2[%c6, %c0_79, %c0_80] : memref<8x8x384xbf16, #tpu.memory_space<vmem>>, vector<1x8x384xbf16>
    %220 = vector.shape_cast %219 : vector<1x8x384xbf16> to vector<8x384xbf16>
    %221 = arith.extf %220 : vector<8x384xbf16> to vector<8x384xf32>
    %222 = vector.extract_strided_slice %221 {offsets = [0, 0], sizes = [8, 128], strides = [1, 1]} : vector<8x384xf32> to vector<8x128xf32>
    %223 = vector.extract_strided_slice %218 {offsets = [0, 0], sizes = [8, 128], strides = [1, 1]} : vector<8x384xf32> to vector<8x128xf32>
    %224 = arith.addf %222, %223 : vector<8x128xf32>
    %225 = arith.negf %224 : vector<8x128xf32>
    %226 = math.exp %225 : vector<8x128xf32>
    %cst_81 = arith.constant 1.000000e+00 : f32
    %227 = vector.broadcast %cst_81 : f32 to vector<8x128xf32>
    %228 = arith.addf %227, %226 : vector<8x128xf32>
    %229 = arith.divf %227, %228 : vector<8x128xf32>
    %230 = vector.extract_strided_slice %221 {offsets = [0, 128], sizes = [8, 128], strides = [1, 1]} : vector<8x384xf32> to vector<8x128xf32>
    %231 = vector.extract_strided_slice %218 {offsets = [0, 128], sizes = [8, 128], strides = [1, 1]} : vector<8x384xf32> to vector<8x128xf32>
    %232 = arith.addf %230, %231 : vector<8x128xf32>
    %233 = arith.negf %232 : vector<8x128xf32>
    %234 = math.exp %233 : vector<8x128xf32>
    %cst_82 = arith.constant 1.000000e+00 : f32
    %235 = vector.broadcast %cst_82 : f32 to vector<8x128xf32>
    %236 = arith.addf %235, %234 : vector<8x128xf32>
    %237 = arith.divf %235, %236 : vector<8x128xf32>
    %238 = vector.extract_strided_slice %221 {offsets = [0, 256], sizes = [8, 128], strides = [1, 1]} : vector<8x384xf32> to vector<8x128xf32>
    %239 = vector.extract_strided_slice %218 {offsets = [0, 256], sizes = [8, 128], strides = [1, 1]} : vector<8x384xf32> to vector<8x128xf32>
    %240 = arith.addf %239, %6 : vector<8x128xf32>
    %241 = arith.mulf %229, %240 : vector<8x128xf32>
    %242 = arith.addf %238, %241 : vector<8x128xf32>
    %243 = math.tanh %242 : vector<8x128xf32>
    %244 = arith.subf %217, %243 : vector<8x128xf32>
    %245 = arith.mulf %237, %244 : vector<8x128xf32>
    %246 = arith.addf %243, %245 : vector<8x128xf32>
    %c0_83 = arith.constant 0 : index
    %c0_84 = arith.constant 0 : index
    %247 = vector.load %arg7[%c0_83, %c0_84] : memref<8x128xf32, #tpu.memory_space<vmem>>, vector<8x128xf32>
    tpu.vector_store %arg7[%c0_83, %c0_84], %246 {strides = array<i32>} : memref<8x128xf32, #tpu.memory_space<vmem>>, vector<8x128xf32>,
    %248 = arith.truncf %246 : vector<8x128xf32> to vector<8x128xbf16>
    %c6_85 = arith.constant 6 : index
    %c0_86 = arith.constant 0 : index
    %c0_87 = arith.constant 0 : index
    %249 = vector.load %arg6[%c6_85, %c0_86, %c0_87] : memref<8x8x128xbf16, #tpu.memory_space<vmem>>, vector<1x8x128xbf16>
    %250 = vector.shape_cast %249 : vector<1x8x128xbf16> to vector<8x128xbf16>
    %251 = vector.shape_cast %248 : vector<8x128xbf16> to vector<1x8x128xbf16>
    tpu.vector_store %arg6[%c6_85, %c0_86, %c0_87], %251 {strides = array<i32>} : memref<8x8x128xbf16, #tpu.memory_space<vmem>>, vector<1x8x128xbf16>,
    %c0_88 = arith.constant 0 : index
    %c0_89 = arith.constant 0 : index
    %252 = vector.load %arg7[%c0_88, %c0_89] : memref<8x128xf32, #tpu.memory_space<vmem>>, vector<8x128xf32>
    %cst_90 = arith.constant dense<0.000000e+00> : vector<8x384xf32>
    %253 = tpu.matmul %252, %3, %cst_90 {dimension_numbers = #tpu.dot_dimension_numbers<[1], [0], [0], [1], [0, 0, 1, 1], [], []>} : vector<8x128xf32>, vector<128x384xf32>, vector<8x384xf32> -> vector<8x384xf32>
    %c7 = arith.constant 7 : index
    %c0_91 = arith.constant 0 : index
    %c0_92 = arith.constant 0 : index
    %254 = vector.load %arg2[%c7, %c0_91, %c0_92] : memref<8x8x384xbf16, #tpu.memory_space<vmem>>, vector<1x8x384xbf16>
    %255 = vector.shape_cast %254 : vector<1x8x384xbf16> to vector<8x384xbf16>
    %256 = arith.extf %255 : vector<8x384xbf16> to vector<8x384xf32>
    %257 = vector.extract_strided_slice %256 {offsets = [0, 0], sizes = [8, 128], strides = [1, 1]} : vector<8x384xf32> to vector<8x128xf32>
    %258 = vector.extract_strided_slice %253 {offsets = [0, 0], sizes = [8, 128], strides = [1, 1]} : vector<8x384xf32> to vector<8x128xf32>
    %259 = arith.addf %257, %258 : vector<8x128xf32>
    %260 = arith.negf %259 : vector<8x128xf32>
    %261 = math.exp %260 : vector<8x128xf32>
    %cst_93 = arith.constant 1.000000e+00 : f32
    %262 = vector.broadcast %cst_93 : f32 to vector<8x128xf32>
    %263 = arith.addf %262, %261 : vector<8x128xf32>
    %264 = arith.divf %262, %263 : vector<8x128xf32>
    %265 = vector.extract_strided_slice %256 {offsets = [0, 128], sizes = [8, 128], strides = [1, 1]} : vector<8x384xf32> to vector<8x128xf32>
    %266 = vector.extract_strided_slice %253 {offsets = [0, 128], sizes = [8, 128], strides = [1, 1]} : vector<8x384xf32> to vector<8x128xf32>
    %267 = arith.addf %265, %266 : vector<8x128xf32>
    %268 = arith.negf %267 : vector<8x128xf32>
    %269 = math.exp %268 : vector<8x128xf32>
    %cst_94 = arith.constant 1.000000e+00 : f32
    %270 = vector.broadcast %cst_94 : f32 to vector<8x128xf32>
    %271 = arith.addf %270, %269 : vector<8x128xf32>
    %272 = arith.divf %270, %271 : vector<8x128xf32>
    %273 = vector.extract_strided_slice %256 {offsets = [0, 256], sizes = [8, 128], strides = [1, 1]} : vector<8x384xf32> to vector<8x128xf32>
    %274 = vector.extract_strided_slice %253 {offsets = [0, 256], sizes = [8, 128], strides = [1, 1]} : vector<8x384xf32> to vector<8x128xf32>
    %275 = arith.addf %274, %6 : vector<8x128xf32>
    %276 = arith.mulf %264, %275 : vector<8x128xf32>
    %277 = arith.addf %273, %276 : vector<8x128xf32>
    %278 = math.tanh %277 : vector<8x128xf32>
    %279 = arith.subf %252, %278 : vector<8x128xf32>
    %280 = arith.mulf %272, %279 : vector<8x128xf32>
    %281 = arith.addf %278, %280 : vector<8x128xf32>
    %c0_95 = arith.constant 0 : index
    %c0_96 = arith.constant 0 : index
    %282 = vector.load %arg7[%c0_95, %c0_96] : memref<8x128xf32, #tpu.memory_space<vmem>>, vector<8x128xf32>
    tpu.vector_store %arg7[%c0_95, %c0_96], %281 {strides = array<i32>} : memref<8x128xf32, #tpu.memory_space<vmem>>, vector<8x128xf32>,
    %283 = arith.truncf %281 : vector<8x128xf32> to vector<8x128xbf16>
    %c7_97 = arith.constant 7 : index
    %c0_98 = arith.constant 0 : index
    %c0_99 = arith.constant 0 : index
    %284 = vector.load %arg6[%c7_97, %c0_98, %c0_99] : memref<8x8x128xbf16, #tpu.memory_space<vmem>>, vector<1x8x128xbf16>
    %285 = vector.shape_cast %284 : vector<1x8x128xbf16> to vector<8x128xbf16>
    %286 = vector.shape_cast %283 : vector<8x128xbf16> to vector<1x8x128xbf16>
    tpu.vector_store %arg6[%c7_97, %c0_98, %c0_99], %286 {strides = array<i32>} : memref<8x8x128xbf16, #tpu.memory_space<vmem>>, vector<1x8x128xbf16>,
    return
  }
  func.func @transform_0(%arg0: i32, %arg1: i32) -> (i32, i32, i32) {
    %c0_i32 = arith.constant 0 : i32
    %c0_i32_0 = arith.constant 0 : i32
    return %arg1, %arg0, %c0_i32 : i32, i32, i32
  }
  func.func @transform_1(%arg0: i32, %arg1: i32) -> (i32, i32) {
    %c0_i32 = arith.constant 0 : i32
    %c0_i32_0 = arith.constant 0 : i32
    return %arg0, %c0_i32 : i32, i32
  }
  func.func @transform_2(%arg0: i32, %arg1: i32) -> (i32, i32) {
    %c0_i32 = arith.constant 0 : i32
    %c0_i32_0 = arith.constant 0 : i32
    %c0_i32_1 = arith.constant 0 : i32
    return %c0_i32, %c0_i32_0 : i32, i32
  }
  func.func @transform_3(%arg0: i32, %arg1: i32) -> (i32, i32) {
    %c0_i32 = arith.constant 0 : i32
    %c0_i32_0 = arith.constant 0 : i32
    %c0_i32_1 = arith.constant 0 : i32
    return %c0_i32, %c0_i32_0 : i32, i32
  }
  func.func @transform_4(%arg0: i32, %arg1: i32) -> (i32, i32, i32) {
    %c0_i32 = arith.constant 0 : i32
    %c0_i32_0 = arith.constant 0 : i32
    return %arg1, %arg0, %c0_i32 : i32, i32, i32
  }
}

</mosaic_0001>

<llo_original>
// kernel: rnn_decoder_forward.5
$region0: #{rnn_decoder_forward.5}
  #allocation0 [shape = 'u32[]', space=smem, size = 0x4, offset = 0x4, fixed_abs, tag = 'smem constant byte address 0x4 - core index']
  #allocation1 [shape = 'u32[144,128]{1,0:T(1,128)}', space=vmem, size = 0x12000, scoped, tag = 'internal scratch']
  %s0 = inlined_call_operand.vmem [shape: bf16[64,128], index: 0, kind: input, shape index: {}]
  %s1 = inlined_call_operand.vmem [shape: bf16[128,128], index: 1, kind: input, shape index: {}]
  %s2 = inlined_call_operand.vmem [shape: f32[1,128], index: 2, kind: input, shape index: {}]
  %s3 = inlined_call_operand.vmem [shape: f32[64,128], index: 3, kind: output, shape index: {}]
  %s4 = sld [smem:[#allocation0]]
  $region22: #{rnn_decoder_forward.5} parent=0
    _
  %s6 = ssub.s32 1, %s4
  %s7 = scalar_select 0, %s6, %s4
  // Predicated region
  $region2: #{rnn_decoder_forward.5} parent=0 // pred_check
    _
  $region3: #{rnn_decoder_forward.5} parent=0 // pred_check_branch
    %9 = sbr.rel (0) target = $region5
  $region4: #{rnn_decoder_forward.5} parent=0 // pred_region
    _
  $region5: #{rnn_decoder_forward.5} parent=0 // pred_fallthru
    _
  // Predicated region
  $region6: #{rnn_decoder_forward.5} parent=0 // pred_check
    _
  $region7: #{rnn_decoder_forward.5} parent=0 // pred_check_branch
    %11 = sbr.rel (0) target = $region9
  $region8: #{rnn_decoder_forward.5} parent=0 // pred_region
    _
  $region9: #{rnn_decoder_forward.5} parent=0 // pred_fallthru
    _
  // Predicated region
  $region10: #{rnn_decoder_forward.5} parent=0 // pred_check
    _
  $region11: #{rnn_decoder_forward.5} parent=0 // pred_check_branch
    %13 = sbr.rel (0) target = $region13
  $region12: #{rnn_decoder_forward.5} parent=0 // pred_region
    _
  $region13: #{rnn_decoder_forward.5} parent=0 // pred_fallthru
    _
  %v15 = vld [vmem:[%s0] sm:$0xf]
  %v16 = vld [vmem:[%s0 + $0x4] sm:$0xf]
  %v17 = vld [vmem:[%s0 + $0x8] sm:$0xf]
  %v18 = vld [vmem:[%s0 + $0xc] sm:$0xf]
  %v19 = vld [vmem:[%s0 + $0x10] sm:$0xf]
  %v20 = vld [vmem:[%s0 + $0x14] sm:$0xf]
  %v21 = vld [vmem:[%s0 + $0x18] sm:$0xf]
  %v22 = vld [vmem:[%s0 + $0x1c] sm:$0xf]
  %v23 = vld [vmem:[%s1] sm:$0xf]
  %v24 = vld [vmem:[%s1 + $0x4] sm:$0xf]
  %v25 = vld [vmem:[%s1 + $0x8] sm:$0xf]
  %v26 = vld [vmem:[%s1 + $0xc] sm:$0xf]
  %v27 = vld [vmem:[%s1 + $0x10] sm:$0xf]
  %v28 = vld [vmem:[%s1 + $0x14] sm:$0xf]
  %v29 = vld [vmem:[%s1 + $0x18] sm:$0xf]
  %v30 = vld [vmem:[%s1 + $0x1c] sm:$0xf]
  %v31 = vld [vmem:[%s1 + $0x20] sm:$0xf]
  %v32 = vld [vmem:[%s1 + $0x24] sm:$0xf]
  %v33 = vld [vmem:[%s1 + $0x28] sm:$0xf]
  %v34 = vld [vmem:[%s1 + $0x2c] sm:$0xf]
  %v35 = vld [vmem:[%s1 + $0x30] sm:$0xf]
  %v36 = vld [vmem:[%s1 + $0x34] sm:$0xf]
  %v37 = vld [vmem:[%s1 + $0x38] sm:$0xf]
  %v38 = vld [vmem:[%s1 + $0x3c] sm:$0xf]
  %v39 = vld [vmem:[%s2] sm:$0x1]
  %v41 = vlaneseq
  %v42 = vshrl.u32 %v41, 7
  %v43 = vsub.s32 0, %v42
  %v44 = vrot.slane %v39, %v43
  %v54 = vunpack.c.l.b16 %v15
  %v55 = vunpack.c.l.b16 %v16
  %v56 = vunpack.c.l.b16 %v17
  %v57 = vunpack.c.l.b16 %v18
  %v58 = vunpack.c.l.b16 %v19
  %v59 = vunpack.c.l.b16 %v20
  %v60 = vunpack.c.l.b16 %v21
  %v61 = vunpack.c.l.b16 %v22
  %v62 = vpack.c.b16 %v55, %v54
  %v63 = vpack.c.b16 %v57, %v56
  %v64 = vpack.c.b16 %v59, %v58
  %v65 = vpack.c.b16 %v61, %v60
  %v86 = vunpack.c.l.b16 %v23
  %v87 = vunpack.c.l.b16 %v24
  %v88 = vunpack.c.l.b16 %v25
  %v89 = vunpack.c.l.b16 %v26
  %v90 = vunpack.c.l.b16 %v27
  %v91 = vunpack.c.l.b16 %v28
  %v92 = vunpack.c.l.b16 %v29
  %v93 = vunpack.c.l.b16 %v30
  %v94 = vunpack.c.l.b16 %v31
  %v95 = vunpack.c.l.b16 %v32
  %v96 = vunpack.c.l.b16 %v33
  %v97 = vunpack.c.l.b16 %v34
  %v98 = vunpack.c.l.b16 %v35
  %v99 = vunpack.c.l.b16 %v36
  %v100 = vunpack.c.l.b16 %v37
  %v101 = vunpack.c.l.b16 %v38
  %v102 = vpack.c.b16 %v87, %v86
  %v103 = vpack.c.b16 %v89, %v88
  %v104 = vpack.c.b16 %v91, %v90
  %v105 = vpack.c.b16 %v93, %v92
  %v106 = vpack.c.b16 %v95, %v94
  %v107 = vpack.c.b16 %v97, %v96
  %v108 = vpack.c.b16 %v99, %v98
  %v109 = vpack.c.b16 %v101, %v100
  %118 = vmatprep.subr.bf16.mxu0 0
  %119 = vmatpush1.bf16.msra.mxu0 %v109
  %120 = vmatprep.subr.bf16.mxu0 0
  %121 = vmatpush1.bf16.msra.mxu0 %v108
  %122 = vmatprep.subr.bf16.mxu0 0
  %123 = vmatpush1.bf16.msra.mxu0 %v107
  %124 = vmatprep.subr.bf16.mxu0 0
  %125 = vmatpush1.bf16.msra.mxu0 %v106
  %126 = vmatprep.subr.bf16.mxu0 0
  %127 = vmatpush1.bf16.msra.mxu0 %v105
  %128 = vmatprep.subr.bf16.mxu0 0
  %129 = vmatpush1.bf16.msra.mxu0 %v104
  %130 = vmatprep.subr.bf16.mxu0 0
  %131 = vmatpush1.bf16.msra.mxu0 %v103
  %132 = vmatprep.subr.bf16.mxu0 0
  %133 = vmatpush1.bf16.msra.mxu0 %v102
  %134 = vmatprep.subr.bf16.mxu0 0
  %135 = vmatpush2.bf16.msra.mxu0 0
  %136 = vmatprep.subr.bf16.mxu0 0
  %137 = vmatpush2.bf16.msra.mxu0 0
  %138 = vmatprep.subr.bf16.mxu0 0
  %139 = vmatpush2.bf16.msra.mxu0 0
  %140 = vmatprep.subr.bf16.mxu0 0
  %141 = vmatpush2.bf16.msra.mxu0 0
  %142 = vmatprep.subr.bf16.mxu0 0
  %143 = vmatpush2.bf16.msra.mxu0 0
  %144 = vmatprep.subr.bf16.mxu0 0
  %145 = vmatpush2.bf16.msra.mxu0 0
  %146 = vmatprep.subr.bf16.mxu0 0
  %147 = vmatpush2.bf16.msra.mxu0 0
  %148 = vmatprep.subr.bf16.mxu0 0
  %149 = vmatpush2.bf16.msra.mxu0 0
  %150 = vmatprep.mubr.bf16.mxu0 0
  %151 = vmatmul.mubr.bf16.gmra.mxu0 %v62
  %v152 = vpop.f32.mrf.mxu0
  %v153 = vadd.f32 %v44, %v152
  %v154 = vpop.f32.mrf.mxu0
  %v155 = vpop.f32.mrf.mxu0
  %v156 = vadd.f32 %v44, %v155
  %v157 = vpop.f32.mrf.mxu0
  %158 = vmatprep.mubr.bf16.mxu0 0
  %159 = vmatmul.mubr.bf16.gmra.mxu0 %v63
  %v160 = vpop.f32.mrf.mxu0
  %v161 = vadd.f32 %v44, %v160
  %v162 = vpop.f32.mrf.mxu0
  %v163 = vpop.f32.mrf.mxu0
  %v164 = vadd.f32 %v44, %v163
  %v165 = vpop.f32.mrf.mxu0
  %166 = vmatprep.mubr.bf16.mxu0 0
  %167 = vmatmul.mubr.bf16.gmra.mxu0 %v64
  %v168 = vpop.f32.mrf.mxu0
  %v169 = vadd.f32 %v44, %v168
  %v170 = vpop.f32.mrf.mxu0
  %v171 = vpop.f32.mrf.mxu0
  %v172 = vadd.f32 %v44, %v171
  %v173 = vpop.f32.mrf.mxu0
  %174 = vmatprep.mubr.bf16.mxu0 0
  %175 = vmatmul.mubr.bf16.gmra.mxu0 %v65
  %v176 = vpop.f32.mrf.mxu0
  %v177 = vadd.f32 %v44, %v176
  %v178 = vpop.f32.mrf.mxu0
  %v179 = vpop.f32.mrf.mxu0
  %v180 = vadd.f32 %v44, %v179
  %v181 = vpop.f32.mrf.mxu0
  %182 = vdwg.mxu0
  %183 = vst [vmem:[%s3] sm:$0xff] %v153
  %184 = vst [vmem:[%s3 + $0x8] sm:$0xff] %v156
  %185 = vst [vmem:[%s3 + $0x10] sm:$0xff] %v161
  %186 = vst [vmem:[%s3 + $0x18] sm:$0xff] %v164
  %187 = vst [vmem:[%s3 + $0x20] sm:$0xff] %v169
  %188 = vst [vmem:[%s3 + $0x28] sm:$0xff] %v172
  %189 = vst [vmem:[%s3 + $0x30] sm:$0xff] %v177
  %190 = vst [vmem:[%s3 + $0x38] sm:$0xff] %v180
  // Predicated region
  $region14: #{rnn_decoder_forward.5} parent=0 // pred_check
    _
  $region15: #{rnn_decoder_forward.5} parent=0 // pred_check_branch
    %192 = sbr.rel (0) target = $region17
  $region16: #{rnn_decoder_forward.5} parent=0 // pred_region
    _
  $region17: #{rnn_decoder_forward.5} parent=0 // pred_fallthru
    _
  // Predicated region
  $region18: #{rnn_decoder_forward.5} parent=0 // pred_check
    _
  $region19: #{rnn_decoder_forward.5} parent=0 // pred_check_branch
    %194 = sbr.rel (0) target = $region21
  $region20: #{rnn_decoder_forward.5} parent=0 // pred_region
    _
  $region21: #{rnn_decoder_forward.5} parent=0 // pred_fallthru
    _

// kernel: rnn_decoder_forward.3
$region0: #{rnn_decoder_forward.3}
  #allocation0 [shape = 'u32[]', space=smem, size = 0x4, offset = 0x4, fixed_abs, tag = 'smem constant byte address 0x4 - core index']
  #allocation1 [shape = 'u32[144,128]{1,0:T(1,128)}', space=vmem, size = 0x12000, scoped, tag = 'internal scratch']
  %s0 = inlined_call_operand.vmem [shape: bf16[64,128], index: 0, kind: input, shape index: {}]
  %s1 = inlined_call_operand.vmem [shape: bf16[128,384], index: 1, kind: input, shape index: {}]
  %s2 = inlined_call_operand.vmem [shape: f32[1,384], index: 2, kind: input, shape index: {}]
  %s3 = inlined_call_operand.vmem [shape: bf16[64,384], index: 3, kind: output, shape index: {}]
  %s4 = sld [smem:[#allocation0]]
  $region22: #{rnn_decoder_forward.3} parent=0
    _
  %s6 = ssub.s32 1, %s4
  %s7 = scalar_select 0, %s6, %s4
  // Predicated region
  $region2: #{rnn_decoder_forward.3} parent=0 // pred_check
    _
  $region3: #{rnn_decoder_forward.3} parent=0 // pred_check_branch
    %9 = sbr.rel (0) target = $region5
  $region4: #{rnn_decoder_forward.3} parent=0 // pred_region
    _
  $region5: #{rnn_decoder_forward.3} parent=0 // pred_fallthru
    _
  // Predicated region
  $region6: #{rnn_decoder_forward.3} parent=0 // pred_check
    _
  $region7: #{rnn_decoder_forward.3} parent=0 // pred_check_branch
    %11 = sbr.rel (0) target = $region9
  $region8: #{rnn_decoder_forward.3} parent=0 // pred_region
    _
  $region9: #{rnn_decoder_forward.3} parent=0 // pred_fallthru
    _
  // Predicated region
  $region10: #{rnn_decoder_forward.3} parent=0 // pred_check
    _
  $region11: #{rnn_decoder_forward.3} parent=0 // pred_check_branch
    %13 = sbr.rel (0) target = $region13
  $region12: #{rnn_decoder_forward.3} parent=0 // pred_region
    _
  $region13: #{rnn_decoder_forward.3} parent=0 // pred_fallthru
    _
  %v15 = vld [vmem:[%s0] sm:$0xf]
  %v16 = vld [vmem:[%s0 + $0x4] sm:$0xf]
  %v17 = vld [vmem:[%s0 + $0x8] sm:$0xf]
  %v18 = vld [vmem:[%s0 + $0xc] sm:$0xf]
  %v19 = vld [vmem:[%s0 + $0x10] sm:$0xf]
  %v20 = vld [vmem:[%s0 + $0x14] sm:$0xf]
  %v21 = vld [vmem:[%s0 + $0x18] sm:$0xf]
  %v22 = vld [vmem:[%s0 + $0x1c] sm:$0xf]
  %v23 = vld [vmem:[%s1] sm:$0xff]
  %v24 = vld [vmem:[%s1 + $0x8] sm:$0xf]
  %v25 = vld [vmem:[%s1 + $0xc] sm:$0xff]
  %v26 = vld [vmem:[%s1 + $0x14] sm:$0xf]
  %v27 = vld [vmem:[%s1 + $0x18] sm:$0xff]
  %v28 = vld [vmem:[%s1 + $0x20] sm:$0xf]
  %v29 = vld [vmem:[%s1 + $0x24] sm:$0xff]
  %v30 = vld [vmem:[%s1 + $0x2c] sm:$0xf]
  %v31 = vld [vmem:[%s1 + $0x30] sm:$0xff]
  %v32 = vld [vmem:[%s1 + $0x38] sm:$0xf]
  %v33 = vld [vmem:[%s1 + $0x3c] sm:$0xff]
  %v34 = vld [vmem:[%s1 + $0x44] sm:$0xf]
  %v35 = vld [vmem:[%s1 + $0x48] sm:$0xff]
  %v36 = vld [vmem:[%s1 + $0x50] sm:$0xf]
  %v37 = vld [vmem:[%s1 + $0x54] sm:$0xff]
  %v38 = vld [vmem:[%s1 + $0x5c] sm:$0xf]
  %v39 = vld [vmem:[%s1 + $0x60] sm:$0xff]
  %v40 = vld [vmem:[%s1 + $0x68] sm:$0xf]
  %v41 = vld [vmem:[%s1 + $0x6c] sm:$0xff]
  %v42 = vld [vmem:[%s1 + $0x74] sm:$0xf]
  %v43 = vld [vmem:[%s1 + $0x78] sm:$0xff]
  %v44 = vld [vmem:[%s1 + $0x80] sm:$0xf]
  %v45 = vld [vmem:[%s1 + $0x84] sm:$0xff]
  %v46 = vld [vmem:[%s1 + $0x8c] sm:$0xf]
  %v47 = vld [vmem:[%s1 + $0x90] sm:$0xff]
  %v48 = vld [vmem:[%s1 + $0x98] sm:$0xf]
  %v49 = vld [vmem:[%s1 + $0x9c] sm:$0xff]
  %v50 = vld [vmem:[%s1 + $0xa4] sm:$0xf]
  %v51 = vld [vmem:[%s1 + $0xa8] sm:$0xff]
  %v52 = vld [vmem:[%s1 + $0xb0] sm:$0xf]
  %v53 = vld [vmem:[%s1 + $0xb4] sm:$0xff]
  %v54 = vld [vmem:[%s1 + $0xbc] sm:$0xf]
  %v55 = vld [vmem:[%s2] sm:$0x7]
  %v57 = vlaneseq
  %v58 = vshrl.u32 %v57, 7
  %v59 = vsub.s32 0, %v58
  %v60 = vrot.slane %v55, %v59
  %v61 = vlaneseq
  %v62 = vshrl.u32 %v61, 7
  %v63 = vsub.s32 1, %v62
  %v64 = vrot.slane %v55, %v63
  %v65 = vlaneseq
  %v66 = vshrl.u32 %v65, 7
  %v67 = vsub.s32 2, %v66
  %v68 = vrot.slane %v55, %v67
  %v80 = vunpack.c.l.b16 %v15
  %v81 = vunpack.c.l.b16 %v16
  %v82 = vunpack.c.l.b16 %v17
  %v83 = vunpack.c.l.b16 %v18
  %v84 = vunpack.c.l.b16 %v19
  %v85 = vunpack.c.l.b16 %v20
  %v86 = vunpack.c.l.b16 %v21
  %v87 = vunpack.c.l.b16 %v22
  %v88 = vpack.c.b16 %v81, %v80
  %v89 = vpack.c.b16 %v83, %v82
  %v90 = vpack.c.b16 %v85, %v84
  %v91 = vpack.c.b16 %v87, %v86
  %v128 = vunpack.c.l.b16 %v23
  %v129 = vunpack.c.h.b16 %v23
  %v130 = vunpack.c.l.b16 %v24
  %v131 = vunpack.c.l.b16 %v25
  %v132 = vunpack.c.h.b16 %v25
  %v133 = vunpack.c.l.b16 %v26
  %v134 = vunpack.c.l.b16 %v27
  %v135 = vunpack.c.h.b16 %v27
  %v136 = vunpack.c.l.b16 %v28
  %v137 = vunpack.c.l.b16 %v29
  %v138 = vunpack.c.h.b16 %v29
  %v139 = vunpack.c.l.b16 %v30
  %v140 = vunpack.c.l.b16 %v31
  %v141 = vunpack.c.h.b16 %v31
  %v142 = vunpack.c.l.b16 %v32
  %v143 = vunpack.c.l.b16 %v33
  %v144 = vunpack.c.h.b16 %v33
  %v145 = vunpack.c.l.b16 %v34
  %v146 = vunpack.c.l.b16 %v35
  %v147 = vunpack.c.h.b16 %v35
  %v148 = vunpack.c.l.b16 %v36
  %v149 = vunpack.c.l.b16 %v37
  %v150 = vunpack.c.h.b16 %v37
  %v151 = vunpack.c.l.b16 %v38
  %v152 = vunpack.c.l.b16 %v39
  %v153 = vunpack.c.h.b16 %v39
  %v154 = vunpack.c.l.b16 %v40
  %v155 = vunpack.c.l.b16 %v41
  %v156 = vunpack.c.h.b16 %v41
  %v157 = vunpack.c.l.b16 %v42
  %v158 = vunpack.c.l.b16 %v43
  %v159 = vunpack.c.h.b16 %v43
  %v160 = vunpack.c.l.b16 %v44
  %v161 = vunpack.c.l.b16 %v45
  %v162 = vunpack.c.h.b16 %v45
  %v163 = vunpack.c.l.b16 %v46
  %v164 = vunpack.c.l.b16 %v47
  %v165 = vunpack.c.h.b16 %v47
  %v166 = vunpack.c.l.b16 %v48
  %v167 = vunpack.c.l.b16 %v49
  %v168 = vunpack.c.h.b16 %v49
  %v169 = vunpack.c.l.b16 %v50
  %v170 = vunpack.c.l.b16 %v51
  %v171 = vunpack.c.h.b16 %v51
  %v172 = vunpack.c.l.b16 %v52
  %v173 = vunpack.c.l.b16 %v53
  %v174 = vunpack.c.h.b16 %v53
  %v175 = vunpack.c.l.b16 %v54
  %v176 = vpack.c.b16 %v131, %v128
  %v177 = vpack.c.b16 %v132, %v129
  %v178 = vpack.c.b16 %v133, %v130
  %v179 = vpack.c.b16 %v137, %v134
  %v180 = vpack.c.b16 %v138, %v135
  %v181 = vpack.c.b16 %v139, %v136
  %v182 = vpack.c.b16 %v143, %v140
  %v183 = vpack.c.b16 %v144, %v141
  %v184 = vpack.c.b16 %v145, %v142
  %v185 = vpack.c.b16 %v149, %v146
  %v186 = vpack.c.b16 %v150, %v147
  %v187 = vpack.c.b16 %v151, %v148
  %v188 = vpack.c.b16 %v155, %v152
  %v189 = vpack.c.b16 %v156, %v153
  %v190 = vpack.c.b16 %v157, %v154
  %v191 = vpack.c.b16 %v161, %v158
  %v192 = vpack.c.b16 %v162, %v159
  %v193 = vpack.c.b16 %v163, %v160
  %v194 = vpack.c.b16 %v167, %v164
  %v195 = vpack.c.b16 %v168, %v165
  %v196 = vpack.c.b16 %v169, %v166
  %v197 = vpack.c.b16 %v173, %v170
  %v198 = vpack.c.b16 %v174, %v171
  %v199 = vpack.c.b16 %v175, %v172
  %224 = vmatprep.subr.bf16.mxu0 %v198
  %225 = vmatpush1.bf16.msra.mxu0 %v197
  %226 = vmatprep.subr.bf16.mxu0 %v195
  %227 = vmatpush1.bf16.msra.mxu0 %v194
  %228 = vmatprep.subr.bf16.mxu0 %v192
  %229 = vmatpush1.bf16.msra.mxu0 %v191
  %230 = vmatprep.subr.bf16.mxu0 %v189
  %231 = vmatpush1.bf16.msra.mxu0 %v188
  %232 = vmatprep.subr.bf16.mxu0 %v186
  %233 = vmatpush1.bf16.msra.mxu0 %v185
  %234 = vmatprep.subr.bf16.mxu0 %v183
  %235 = vmatpush1.bf16.msra.mxu0 %v182
  %236 = vmatprep.subr.bf16.mxu0 %v180
  %237 = vmatpush1.bf16.msra.mxu0 %v179
  %238 = vmatprep.subr.bf16.mxu0 %v177
  %239 = vmatpush1.bf16.msra.mxu0 %v176
  %240 = vmatprep.subr.bf16.mxu0 0
  %241 = vmatpush2.bf16.msra.mxu0 0
  %242 = vmatprep.subr.bf16.mxu0 0
  %243 = vmatpush2.bf16.msra.mxu0 0
  %244 = vmatprep.subr.bf16.mxu0 0
  %245 = vmatpush2.bf16.msra.mxu0 0
  %246 = vmatprep.subr.bf16.mxu0 0
  %247 = vmatpush2.bf16.msra.mxu0 0
  %248 = vmatprep.subr.bf16.mxu0 0
  %249 = vmatpush2.bf16.msra.mxu0 0
  %250 = vmatprep.subr.bf16.mxu0 0
  %251 = vmatpush2.bf16.msra.mxu0 0
  %252 = vmatprep.subr.bf16.mxu0 0
  %253 = vmatpush2.bf16.msra.mxu0 0
  %254 = vmatprep.subr.bf16.mxu0 0
  %255 = vmatpush2.bf16.msra.mxu0 0
  %256 = vmatprep.mubr.bf16.mxu0 0
  %257 = vmatmul.mubr.bf16.gmra.mxu0 %v88
  %v258 = vpop.f32.mrf.mxu0
  %v259 = vadd.f32 %v60, %v258
  %v260 = vpop.f32.mrf.mxu0
  %v261 = vadd.f32 %v64, %v260
  %v262 = vpop.f32.mrf.mxu0
  %v263 = vadd.f32 %v60, %v262
  %v264 = vpop.f32.mrf.mxu0
  %v265 = vadd.f32 %v64, %v264
  %266 = vmatprep.mubr.bf16.mxu0 0
  %267 = vmatmul.mubr.bf16.gmra.mxu0 %v89
  %v268 = vpop.f32.mrf.mxu0
  %v269 = vadd.f32 %v60, %v268
  %v270 = vpop.f32.mrf.mxu0
  %v271 = vadd.f32 %v64, %v270
  %v272 = vpop.f32.mrf.mxu0
  %v273 = vadd.f32 %v60, %v272
  %v274 = vpop.f32.mrf.mxu0
  %v275 = vadd.f32 %v64, %v274
  %276 = vmatprep.mubr.bf16.mxu0 0
  %277 = vmatmul.mubr.bf16.gmra.mxu0 %v90
  %v278 = vpop.f32.mrf.mxu0
  %v279 = vadd.f32 %v60, %v278
  %v280 = vpop.f32.mrf.mxu0
  %v281 = vadd.f32 %v64, %v280
  %v282 = vpop.f32.mrf.mxu0
  %v283 = vadd.f32 %v60, %v282
  %v284 = vpop.f32.mrf.mxu0
  %v285 = vadd.f32 %v64, %v284
  %286 = vmatprep.mubr.bf16.mxu0 0
  %287 = vmatmul.mubr.bf16.gmra.mxu0 %v91
  %v288 = vpop.f32.mrf.mxu0
  %v289 = vadd.f32 %v60, %v288
  %v290 = vpop.f32.mrf.mxu0
  %v291 = vadd.f32 %v64, %v290
  %v292 = vpop.f32.mrf.mxu0
  %v293 = vadd.f32 %v60, %v292
  %v294 = vpop.f32.mrf.mxu0
  %v295 = vadd.f32 %v64, %v294
  %296 = vdwg.mxu0
  %297 = vmatprep.subr.bf16.mxu0 0
  %298 = vmatpush1.bf16.msra.mxu0 %v199
  %299 = vmatprep.subr.bf16.mxu0 0
  %300 = vmatpush1.bf16.msra.mxu0 %v196
  %301 = vmatprep.subr.bf16.mxu0 0
  %302 = vmatpush1.bf16.msra.mxu0 %v193
  %303 = vmatprep.subr.bf16.mxu0 0
  %304 = vmatpush1.bf16.msra.mxu0 %v190
  %305 = vmatprep.subr.bf16.mxu0 0
  %306 = vmatpush1.bf16.msra.mxu0 %v187
  %307 = vmatprep.subr.bf16.mxu0 0
  %308 = vmatpush1.bf16.msra.mxu0 %v184
  %309 = vmatprep.subr.bf16.mxu0 0
  %310 = vmatpush1.bf16.msra.mxu0 %v181
  %311 = vmatprep.subr.bf16.mxu0 0
  %312 = vmatpush1.bf16.msra.mxu0 %v178
  %313 = vmatprep.subr.bf16.mxu0 0
  %314 = vmatpush2.bf16.msra.mxu0 0
  %315 = vmatprep.subr.bf16.mxu0 0
  %316 = vmatpush2.bf16.msra.mxu0 0
  %317 = vmatprep.subr.bf16.mxu0 0
  %318 = vmatpush2.bf16.msra.mxu0 0
  %319 = vmatprep.subr.bf16.mxu0 0
  %320 = vmatpush2.bf16.msra.mxu0 0
  %321 = vmatprep.subr.bf16.mxu0 0
  %322 = vmatpush2.bf16.msra.mxu0 0
  %323 = vmatprep.subr.bf16.mxu0 0
  %324 = vmatpush2.bf16.msra.mxu0 0
  %325 = vmatprep.subr.bf16.mxu0 0
  %326 = vmatpush2.bf16.msra.mxu0 0
  %327 = vmatprep.subr.bf16.mxu0 0
  %328 = vmatpush2.bf16.msra.mxu0 0
  %329 = vmatprep.mubr.bf16.mxu0 0
  %330 = vmatmul.mubr.bf16.gmra.mxu0 %v88
  %v331 = vpop.f32.mrf.mxu0
  %v332 = vadd.f32 %v68, %v331
  %v333 = vpop.f32.mrf.mxu0
  %v334 = vpop.f32.mrf.mxu0
  %v335 = vadd.f32 %v68, %v334
  %v336 = vpop.f32.mrf.mxu0
  %337 = vmatprep.mubr.bf16.mxu0 0
  %338 = vmatmul.mubr.bf16.gmra.mxu0 %v89
  %v339 = vpop.f32.mrf.mxu0
  %v340 = vadd.f32 %v68, %v339
  %v341 = vpop.f32.mrf.mxu0
  %v342 = vpop.f32.mrf.mxu0
  %v343 = vadd.f32 %v68, %v342
  %v344 = vpop.f32.mrf.mxu0
  %345 = vmatprep.mubr.bf16.mxu0 0
  %346 = vmatmul.mubr.bf16.gmra.mxu0 %v90
  %v347 = vpop.f32.mrf.mxu0
  %v348 = vadd.f32 %v68, %v347
  %v349 = vpop.f32.mrf.mxu0
  %v350 = vpop.f32.mrf.mxu0
  %v351 = vadd.f32 %v68, %v350
  %v352 = vpop.f32.mrf.mxu0
  %353 = vmatprep.mubr.bf16.mxu0 0
  %354 = vmatmul.mubr.bf16.gmra.mxu0 %v91
  %v355 = vpop.f32.mrf.mxu0
  %v356 = vadd.f32 %v68, %v355
  %v357 = vpop.f32.mrf.mxu0
  %v358 = vpop.f32.mrf.mxu0
  %v359 = vadd.f32 %v68, %v358
  %v360 = vpop.f32.mrf.mxu0
  %361 = vdwg.mxu0
  %v362 = vpack.c.bf16 %v263, %v259
  %v363 = vpack.c.bf16 %v265, %v261
  %v364 = vpack.c.bf16 %v335, %v332
  %v365 = vpack.c.bf16 %v273, %v269
  %v366 = vpack.c.bf16 %v275, %v271
  %v367 = vpack.c.bf16 %v343, %v340
  %v368 = vpack.c.bf16 %v283, %v279
  %v369 = vpack.c.bf16 %v285, %v281
  %v370 = vpack.c.bf16 %v351, %v348
  %v371 = vpack.c.bf16 %v293, %v289
  %v372 = vpack.c.bf16 %v295, %v291
  %v373 = vpack.c.bf16 %v359, %v356
  %v386 = vunpack.c.l.b16 %v362
  %v387 = vunpack.c.l.b16 %v363
  %v388 = vunpack.c.l.b16 %v364
  %v389 = vunpack.c.h.b16 %v362
  %v390 = vunpack.c.h.b16 %v363
  %v391 = vunpack.c.h.b16 %v364
  %v392 = vunpack.c.l.b16 %v365
  %v393 = vunpack.c.l.b16 %v366
  %v394 = vunpack.c.l.b16 %v367
  %v395 = vunpack.c.h.b16 %v365
  %v396 = vunpack.c.h.b16 %v366
  %v397 = vunpack.c.h.b16 %v367
  %v398 = vunpack.c.l.b16 %v368
  %v399 = vunpack.c.l.b16 %v369
  %v400 = vunpack.c.l.b16 %v370
  %v401 = vunpack.c.h.b16 %v368
  %v402 = vunpack.c.h.b16 %v369
  %v403 = vunpack.c.h.b16 %v370
  %v404 = vunpack.c.l.b16 %v371
  %v405 = vunpack.c.l.b16 %v372
  %v406 = vunpack.c.l.b16 %v373
  %v407 = vunpack.c.h.b16 %v371
  %v408 = vunpack.c.h.b16 %v372
  %v409 = vunpack.c.h.b16 %v373
  %v410 = vpack.c.b16 %v387, %v386
  %v411 = vpack.c.b16 %v388, %v388
  %v412 = vpack.c.b16 %v390, %v389
  %v413 = vpack.c.b16 %v391, %v391
  %v414 = vpack.c.b16 %v393, %v392
  %v415 = vpack.c.b16 %v394, %v394
  %v416 = vpack.c.b16 %v396, %v395
  %v417 = vpack.c.b16 %v397, %v397
  %v418 = vpack.c.b16 %v399, %v398
  %v419 = vpack.c.b16 %v400, %v400
  %v420 = vpack.c.b16 %v402, %v401
  %v421 = vpack.c.b16 %v403, %v403
  %v422 = vpack.c.b16 %v405, %v404
  %v423 = vpack.c.b16 %v406, %v406
  %v424 = vpack.c.b16 %v408, %v407
  %v425 = vpack.c.b16 %v409, %v409
  %442 = vst [vmem:[%s3] sm:$0xff] %v410
  %443 = vst [vmem:[%s3 + $0x8] sm:$0xf] %v411
  %444 = vst [vmem:[%s3 + $0xc] sm:$0xff] %v412
  %445 = vst [vmem:[%s3 + $0x14] sm:$0xf] %v413
  %446 = vst [vmem:[%s3 + $0x18] sm:$0xff] %v414
  %447 = vst [vmem:[%s3 + $0x20] sm:$0xf] %v415
  %448 = vst [vmem:[%s3 + $0x24] sm:$0xff] %v416
  %449 = vst [vmem:[%s3 + $0x2c] sm:$0xf] %v417
  %450 = vst [vmem:[%s3 + $0x30] sm:$0xff] %v418
  %451 = vst [vmem:[%s3 + $0x38] sm:$0xf] %v419
  %452 = vst [vmem:[%s3 + $0x3c] sm:$0xff] %v420
  %453 = vst [vmem:[%s3 + $0x44] sm:$0xf] %v421
  %454 = vst [vmem:[%s3 + $0x48] sm:$0xff] %v422
  %455 = vst [vmem:[%s3 + $0x50] sm:$0xf] %v423
  %456 = vst [vmem:[%s3 + $0x54] sm:$0xff] %v424
  %457 = vst [vmem:[%s3 + $0x5c] sm:$0xf] %v425
  // Predicated region
  $region14: #{rnn_decoder_forward.3} parent=0 // pred_check
    _
  $region15: #{rnn_decoder_forward.3} parent=0 // pred_check_branch
    %459 = sbr.rel (0) target = $region17
  $region16: #{rnn_decoder_forward.3} parent=0 // pred_region
    _
  $region17: #{rnn_decoder_forward.3} parent=0 // pred_fallthru
    _
  // Predicated region
  $region18: #{rnn_decoder_forward.3} parent=0 // pred_check
    _
  $region19: #{rnn_decoder_forward.3} parent=0 // pred_check_branch
    %461 = sbr.rel (0) target = $region21
  $region20: #{rnn_decoder_forward.3} parent=0 // pred_region
    _
  $region21: #{rnn_decoder_forward.3} parent=0 // pred_fallthru
    _

// kernel: rnn_decoder_forward.4
$region0: #{rnn_decoder_forward.4}
  #allocation0 [shape = 'u32[]', space=smem, size = 0x4, offset = 0x4, fixed_abs, tag = 'smem constant byte address 0x4 - core index']
  #allocation1 [shape = 'u32[144,128]{1,0:T(1,128)}', space=vmem, size = 0x12000, scoped, tag = 'internal scratch']
  #allocation2 [shape = 'f32[8,128]{1,0:T(8,128)}', space=vmem, size = 0x1000, scoped, tag = 'scratch operand']
  %s0 = inlined_call_operand.vmem [shape: bf16[8,8,384], index: 0, kind: input, shape index: {}]
  %s1 = inlined_call_operand.vmem [shape: f32[8,128], index: 1, kind: input, shape index: {}]
  %s2 = inlined_call_operand.vmem [shape: f32[128,384], index: 2, kind: input, shape index: {}]
  %s3 = inlined_call_operand.vmem [shape: f32[1,128], index: 3, kind: input, shape index: {}]
  %s4 = inlined_call_operand.vmem [shape: bf16[8,8,128], index: 4, kind: output, shape index: {}]
  %s5 = sld [smem:[#allocation0]]
  $region30: #{rnn_decoder_forward.4} parent=0
    _
  %s7 = ssub.s32 1, %s5
  %s8 = scalar_select 0, %s7, %s5
  // Predicated region
  $region2: #{rnn_decoder_forward.4} parent=0 // pred_check
    _
  $region3: #{rnn_decoder_forward.4} parent=0 // pred_check_branch
    %10 = sbr.rel (0) target = $region5
  $region4: #{rnn_decoder_forward.4} parent=0 // pred_region
    _
  $region5: #{rnn_decoder_forward.4} parent=0 // pred_fallthru
    _
  // Predicated region
  $region6: #{rnn_decoder_forward.4} parent=0 // pred_check
    _
  $region7: #{rnn_decoder_forward.4} parent=0 // pred_check_branch
    %12 = sbr.rel (0) target = $region9
  $region8: #{rnn_decoder_forward.4} parent=0 // pred_region
    _
  $region9: #{rnn_decoder_forward.4} parent=0 // pred_fallthru
    _
  // Predicated region
  $region10: #{rnn_decoder_forward.4} parent=0 // pred_check
    _
  $region11: #{rnn_decoder_forward.4} parent=0 // pred_check_branch
    %14 = sbr.rel (0) target = $region13
  $region12: #{rnn_decoder_forward.4} parent=0 // pred_region
    _
  $region13: #{rnn_decoder_forward.4} parent=0 // pred_fallthru
    _
  // Predicated region
  $region14: #{rnn_decoder_forward.4} parent=0 // pred_check
    _
  $region15: #{rnn_decoder_forward.4} parent=0 // pred_check_branch
    %16 = sbr.rel (0) target = $region17
  $region16: #{rnn_decoder_forward.4} parent=0 // pred_region
    _
  $region17: #{rnn_decoder_forward.4} parent=0 // pred_fallthru
    _
  %p17 = scmp.eq.s32.totalorder 0, 0
  // Predicated region
  $region18: #{rnn_decoder_forward.4} parent=0 // pred_check
    %p18 = pneg %p17
  $region19: #{rnn_decoder_forward.4} parent=0 // pred_check_branch
    %20 = sbr.rel (%p18) target = $region21
  $region20: #{rnn_decoder_forward.4} parent=0 // pred_region
    %v21 = vld [vmem:[%s1] sm:$0xff]
    %22 = vst [vmem:[#allocation2] sm:$0xff] %v21
  $region21: #{rnn_decoder_forward.4} parent=0 // pred_fallthru
    _
  %v23 = vld [vmem:[%s2] sm:$0xff]
  %v24 = vld [vmem:[%s2 + $0x8] sm:$0xff]
  %v25 = vld [vmem:[%s2 + $0x10] sm:$0xff]
  %v26 = vld [vmem:[%s2 + $0x18] sm:$0xff]
  %v27 = vld [vmem:[%s2 + $0x20] sm:$0xff]
  %v28 = vld [vmem:[%s2 + $0x28] sm:$0xff]
  %v29 = vld [vmem:[%s2 + $0x30] sm:$0xff]
  %v30 = vld [vmem:[%s2 + $0x38] sm:$0xff]
  %v31 = vld [vmem:[%s2 + $0x40] sm:$0xff]
  %v32 = vld [vmem:[%s2 + $0x48] sm:$0xff]
  %v33 = vld [vmem:[%s2 + $0x50] sm:$0xff]
  %v34 = vld [vmem:[%s2 + $0x58] sm:$0xff]
  %v35 = vld [vmem:[%s2 + $0x60] sm:$0xff]
  %v36 = vld [vmem:[%s2 + $0x68] sm:$0xff]
  %v37 = vld [vmem:[%s2 + $0x70] sm:$0xff]
  %v38 = vld [vmem:[%s2 + $0x78] sm:$0xff]
  %v39 = vld [vmem:[%s2 + $0x80] sm:$0xff]
  %v40 = vld [vmem:[%s2 + $0x88] sm:$0xff]
  %v41 = vld [vmem:[%s2 + $0x90] sm:$0xff]
  %v42 = vld [vmem:[%s2 + $0x98] sm:$0xff]
  %v43 = vld [vmem:[%s2 + $0xa0] sm:$0xff]
  %v44 = vld [vmem:[%s2 + $0xa8] sm:$0xff]
  %v45 = vld [vmem:[%s2 + $0xb0] sm:$0xff]
  %v46 = vld [vmem:[%s2 + $0xb8] sm:$0xff]
  %v47 = vld [vmem:[%s2 + $0xc0] sm:$0xff]
  %v48 = vld [vmem:[%s2 + $0xc8] sm:$0xff]
  %v49 = vld [vmem:[%s2 + $0xd0] sm:$0xff]
  %v50 = vld [vmem:[%s2 + $0xd8] sm:$0xff]
  %v51 = vld [vmem:[%s2 + $0xe0] sm:$0xff]
  %v52 = vld [vmem:[%s2 + $0xe8] sm:$0xff]
  %v53 = vld [vmem:[%s2 + $0xf0] sm:$0xff]
  %v54 = vld [vmem:[%s2 + $0xf8] sm:$0xff]
  %v55 = vld [vmem:[%s2 + $0x100] sm:$0xff]
  %v56 = vld [vmem:[%s2 + $0x108] sm:$0xff]
  %v57 = vld [vmem:[%s2 + $0x110] sm:$0xff]
  %v58 = vld [vmem:[%s2 + $0x118] sm:$0xff]
  %v59 = vld [vmem:[%s2 + $0x120] sm:$0xff]
  %v60 = vld [vmem:[%s2 + $0x128] sm:$0xff]
  %v61 = vld [vmem:[%s2 + $0x130] sm:$0xff]
  %v62 = vld [vmem:[%s2 + $0x138] sm:$0xff]
  %v63 = vld [vmem:[%s2 + $0x140] sm:$0xff]
  %v64 = vld [vmem:[%s2 + $0x148] sm:$0xff]
  %v65 = vld [vmem:[%s2 + $0x150] sm:$0xff]
  %v66 = vld [vmem:[%s2 + $0x158] sm:$0xff]
  %v67 = vld [vmem:[%s2 + $0x160] sm:$0xff]
  %v68 = vld [vmem:[%s2 + $0x168] sm:$0xff]
  %v69 = vld [vmem:[%s2 + $0x170] sm:$0xff]
  %v70 = vld [vmem:[%s2 + $0x178] sm:$0xff]
  %v71 = vld [vmem:[%s3] sm:$0x1]
  %v73 = vlaneseq
  %v74 = vshrl.u32 %v73, 7
  %v75 = vsub.s32 0, %v74
  %v76 = vrot.slane %v71, %v75
  %v78 = vld [vmem:[#allocation2] sm:$0xff]
  %79 = vmatprep.subr.mxu0 %v69
  %80 = vmatpush1.msra.mxu0 %v68
  %81 = vmatprep.subr.mxu0 %v66
  %82 = vmatpush1.msra.mxu0 %v65
  %83 = vmatprep.subr.mxu0 %v63
  %84 = vmatpush1.msra.mxu0 %v62
  %85 = vmatprep.subr.mxu0 %v60
  %86 = vmatpush1.msra.mxu0 %v59
  %87 = vmatprep.subr.mxu0 %v57
  %88 = vmatpush1.msra.mxu0 %v56
  %89 = vmatprep.subr.mxu0 %v54
  %90 = vmatpush1.msra.mxu0 %v53
  %91 = vmatprep.subr.mxu0 %v51
  %92 = vmatpush1.msra.mxu0 %v50
  %93 = vmatprep.subr.mxu0 %v48
  %94 = vmatpush1.msra.mxu0 %v47
  %95 = vmatprep.subr.mxu0 %v45
  %96 = vmatpush1.msra.mxu0 %v44
  %97 = vmatprep.subr.mxu0 %v42
  %98 = vmatpush1.msra.mxu0 %v41
  %99 = vmatprep.subr.mxu0 %v39
  %100 = vmatpush1.msra.mxu0 %v38
  %101 = vmatprep.subr.mxu0 %v36
  %102 = vmatpush1.msra.mxu0 %v35
  %103 = vmatprep.subr.mxu0 %v33
  %104 = vmatpush1.msra.mxu0 %v32
  %105 = vmatprep.subr.mxu0 %v30
  %106 = vmatpush1.msra.mxu0 %v29
  %107 = vmatprep.subr.mxu0 %v27
  %108 = vmatpush1.msra.mxu0 %v26
  %109 = vmatprep.subr.mxu0 %v24
  %110 = vmatpush1.msra.mxu0 %v23
  %111 = vmatprep.subr.mxu0 0.0
  %112 = vmatpush2.msra.mxu0 0.0
  %113 = vmatprep.subr.mxu0 0.0
  %114 = vmatpush2.msra.mxu0 0.0
  %115 = vmatprep.subr.mxu0 0.0
  %116 = vmatpush2.msra.mxu0 0.0
  %117 = vmatprep.subr.mxu0 0.0
  %118 = vmatpush2.msra.mxu0 0.0
  %119 = vmatprep.subr.mxu0 0.0
  %120 = vmatpush2.msra.mxu0 0.0
  %121 = vmatprep.subr.mxu0 0.0
  %122 = vmatpush2.msra.mxu0 0.0
  %123 = vmatprep.subr.mxu0 0.0
  %124 = vmatpush2.msra.mxu0 0.0
  %125 = vmatprep.subr.mxu0 0.0
  %126 = vmatpush2.msra.mxu0 0.0
  %127 = vmatprep.subr.mxu0 0.0
  %128 = vmatpush2.msra.mxu0 0.0
  %129 = vmatprep.subr.mxu0 0.0
  %130 = vmatpush2.msra.mxu0 0.0
  %131 = vmatprep.subr.mxu0 0.0
  %132 = vmatpush2.msra.mxu0 0.0
  %133 = vmatprep.subr.mxu0 0.0
  %134 = vmatpush2.msra.mxu0 0.0
  %135 = vmatprep.subr.mxu0 0.0
  %136 = vmatpush2.msra.mxu0 0.0
  %137 = vmatprep.subr.mxu0 0.0
  %138 = vmatpush2.msra.mxu0 0.0
  %139 = vmatprep.subr.mxu0 0.0
  %140 = vmatpush2.msra.mxu0 0.0
  %141 = vmatprep.subr.mxu0 0.0
  %142 = vmatpush2.msra.mxu0 0.0
  %143 = vmatprep.mubr.f32.mxu0 0.0
  %144 = vmatmul.mubr.f32.gmra.mxu0 %v78
  %v145 = vpop.f32.mrf.mxu0
  %v146 = vadd.f32 0.0, %v145
  %v147 = vpop.f32.mrf.mxu0
  %v148 = vadd.f32 0.0, %v147
  %149 = vdwg.mxu0
  %150 = vmatprep.subr.mxu0 0.0
  %151 = vmatpush1.msra.mxu0 %v70
  %152 = vmatprep.subr.mxu0 0.0
  %153 = vmatpush1.msra.mxu0 %v67
  %154 = vmatprep.subr.mxu0 0.0
  %155 = vmatpush1.msra.mxu0 %v64
  %156 = vmatprep.subr.mxu0 0.0
  %157 = vmatpush1.msra.mxu0 %v61
  %158 = vmatprep.subr.mxu0 0.0
  %159 = vmatpush1.msra.mxu0 %v58
  %160 = vmatprep.subr.mxu0 0.0
  %161 = vmatpush1.msra.mxu0 %v55
  %162 = vmatprep.subr.mxu0 0.0
  %163 = vmatpush1.msra.mxu0 %v52
  %164 = vmatprep.subr.mxu0 0.0
  %165 = vmatpush1.msra.mxu0 %v49
  %166 = vmatprep.subr.mxu0 0.0
  %167 = vmatpush1.msra.mxu0 %v46
  %168 = vmatprep.subr.mxu0 0.0
  %169 = vmatpush1.msra.mxu0 %v43
  %170 = vmatprep.subr.mxu0 0.0
  %171 = vmatpush1.msra.mxu0 %v40
  %172 = vmatprep.subr.mxu0 0.0
  %173 = vmatpush1.msra.mxu0 %v37
  %174 = vmatprep.subr.mxu0 0.0
  %175 = vmatpush1.msra.mxu0 %v34
  %176 = vmatprep.subr.mxu0 0.0
  %177 = vmatpush1.msra.mxu0 %v31
  %178 = vmatprep.subr.mxu0 0.0
  %179 = vmatpush1.msra.mxu0 %v28
  %180 = vmatprep.subr.mxu0 0.0
  %181 = vmatpush1.msra.mxu0 %v25
  %182 = vmatprep.subr.mxu0 0.0
  %183 = vmatpush2.msra.mxu0 0.0
  %184 = vmatprep.subr.mxu0 0.0
  %185 = vmatpush2.msra.mxu0 0.0
  %186 = vmatprep.subr.mxu0 0.0
  %187 = vmatpush2.msra.mxu0 0.0
  %188 = vmatprep.subr.mxu0 0.0
  %189 = vmatpush2.msra.mxu0 0.0
  %190 = vmatprep.subr.mxu0 0.0
  %191 = vmatpush2.msra.mxu0 0.0
  %192 = vmatprep.subr.mxu0 0.0
  %193 = vmatpush2.msra.mxu0 0.0
  %194 = vmatprep.subr.mxu0 0.0
  %195 = vmatpush2.msra.mxu0 0.0
  %196 = vmatprep.subr.mxu0 0.0
  %197 = vmatpush2.msra.mxu0 0.0
  %198 = vmatprep.subr.mxu0 0.0
  %199 = vmatpush2.msra.mxu0 0.0
  %200 = vmatprep.subr.mxu0 0.0
  %201 = vmatpush2.msra.mxu0 0.0
  %202 = vmatprep.subr.mxu0 0.0
  %203 = vmatpush2.msra.mxu0 0.0
  %204 = vmatprep.subr.mxu0 0.0
  %205 = vmatpush2.msra.mxu0 0.0
  %206 = vmatprep.subr.mxu0 0.0
  %207 = vmatpush2.msra.mxu0 0.0
  %208 = vmatprep.subr.mxu0 0.0
  %209 = vmatpush2.msra.mxu0 0.0
  %210 = vmatprep.subr.mxu0 0.0
  %211 = vmatpush2.msra.mxu0 0.0
  %212 = vmatprep.subr.mxu0 0.0
  %213 = vmatpush2.msra.mxu0 0.0
  %214 = vmatprep.mubr.f32.mxu0 0.0
  %215 = vmatmul.mubr.f32.gmra.mxu0 %v78
  %v216 = vpop.f32.mrf.mxu0
  %v217 = vadd.f32 0.0, %v216
  %v218 = vpop.f32.mrf.mxu0
  %219 = vdwg.mxu0
  %v220 = vld [vmem:[%s0] sm:$0xff]
  %v221 = vld [vmem:[%s0 + $0x8] sm:$0xf]
  %v222 = vunpack.c.l.bf16 %v220
  %v223 = vunpack.c.h.bf16 %v220
  %v224 = vunpack.c.l.bf16 %v221
  %v225 = vadd.f32 %v222, %v146
  %v226 = vxor.u32 %v225, 2147483648
  %v227 = vmul.f32 %v226, 1.442695
  %v228 = vpow.pop %v227
  %v229 = vadd.f32 %v228, 1.0
  %v230 = vrcp.pop %v229
  %v231 = vmul.f32 1.0, %v230
  %v232 = vadd.f32 %v223, %v148
  %v233 = vxor.u32 %v232, 2147483648
  %v234 = vmul.f32 %v233, 1.442695
  %v235 = vpow.pop %v234
  %v236 = vadd.f32 %v235, 1.0
  %v237 = vrcp.pop %v236
  %v238 = vmul.f32 1.0, %v237
  %v239 = vadd.f32 %v217, %v76
  %v240 = vmul.f32 %v231, %v239
  %v241 = vadd.f32 %v224, %v240
  %v242 = vtanh.pop %v241
  %v243 = vsub.f32 %v78, %v242
  %v244 = vmul.f32 %v238, %v243
  %v245 = vadd.f32 %v242, %v244
  %246 = vst [vmem:[#allocation2] sm:$0xff] %v245
  %v247 = vpack.c.bf16 %v245, %v245
  %248 = vst [vmem:[%s4] sm:$0xf] %v247
  %v249 = vld [vmem:[#allocation2] sm:$0xff]
  %250 = vmatprep.subr.mxu0 %v69
  %251 = vmatpush1.msra.mxu0 %v68
  %252 = vmatprep.subr.mxu0 %v66
  %253 = vmatpush1.msra.mxu0 %v65
  %254 = vmatprep.subr.mxu0 %v63
  %255 = vmatpush1.msra.mxu0 %v62
  %256 = vmatprep.subr.mxu0 %v60
  %257 = vmatpush1.msra.mxu0 %v59
  %258 = vmatprep.subr.mxu0 %v57
  %259 = vmatpush1.msra.mxu0 %v56
  %260 = vmatprep.subr.mxu0 %v54
  %261 = vmatpush1.msra.mxu0 %v53
  %262 = vmatprep.subr.mxu0 %v51
  %263 = vmatpush1.msra.mxu0 %v50
  %264 = vmatprep.subr.mxu0 %v48
  %265 = vmatpush1.msra.mxu0 %v47
  %266 = vmatprep.subr.mxu0 %v45
  %267 = vmatpush1.msra.mxu0 %v44
  %268 = vmatprep.subr.mxu0 %v42
  %269 = vmatpush1.msra.mxu0 %v41
  %270 = vmatprep.subr.mxu0 %v39
  %271 = vmatpush1.msra.mxu0 %v38
  %272 = vmatprep.subr.mxu0 %v36
  %273 = vmatpush1.msra.mxu0 %v35
  %274 = vmatprep.subr.mxu0 %v33
  %275 = vmatpush1.msra.mxu0 %v32
  %276 = vmatprep.subr.mxu0 %v30
  %277 = vmatpush1.msra.mxu0 %v29
  %278 = vmatprep.subr.mxu0 %v27
  %279 = vmatpush1.msra.mxu0 %v26
  %280 = vmatprep.subr.mxu0 %v24
  %281 = vmatpush1.msra.mxu0 %v23
  %282 = vmatprep.subr.mxu0 0.0
  %283 = vmatpush2.msra.mxu0 0.0
  %284 = vmatprep.subr.mxu0 0.0
  %285 = vmatpush2.msra.mxu0 0.0
  %286 = vmatprep.subr.mxu0 0.0
  %287 = vmatpush2.msra.mxu0 0.0
  %288 = vmatprep.subr.mxu0 0.0
  %289 = vmatpush2.msra.mxu0 0.0
  %290 = vmatprep.subr.mxu0 0.0
  %291 = vmatpush2.msra.mxu0 0.0
  %292 = vmatprep.subr.mxu0 0.0
  %293 = vmatpush2.msra.mxu0 0.0
  %294 = vmatprep.subr.mxu0 0.0
  %295 = vmatpush2.msra.mxu0 0.0
  %296 = vmatprep.subr.mxu0 0.0
  %297 = vmatpush2.msra.mxu0 0.0
  %298 = vmatprep.subr.mxu0 0.0
  %299 = vmatpush2.msra.mxu0 0.0
  %300 = vmatprep.subr.mxu0 0.0
  %301 = vmatpush2.msra.mxu0 0.0
  %302 = vmatprep.subr.mxu0 0.0
  %303 = vmatpush2.msra.mxu0 0.0
  %304 = vmatprep.subr.mxu0 0.0
  %305 = vmatpush2.msra.mxu0 0.0
  %306 = vmatprep.subr.mxu0 0.0
  %307 = vmatpush2.msra.mxu0 0.0
  %308 = vmatprep.subr.mxu0 0.0
  %309 = vmatpush2.msra.mxu0 0.0
  %310 = vmatprep.subr.mxu0 0.0
  %311 = vmatpush2.msra.mxu0 0.0
  %312 = vmatprep.subr.mxu0 0.0
  %313 = vmatpush2.msra.mxu0 0.0
  %314 = vmatprep.mubr.f32.mxu0 0.0
  %315 = vmatmul.mubr.f32.gmra.mxu0 %v249
  %v316 = vpop.f32.mrf.mxu0
  %v317 = vadd.f32 0.0, %v316
  %v318 = vpop.f32.mrf.mxu0
  %v319 = vadd.f32 0.0, %v318
  %320 = vdwg.mxu0
  %321 = vmatprep.subr.mxu0 0.0
  %322 = vmatpush1.msra.mxu0 %v70
  %323 = vmatprep.subr.mxu0 0.0
  %324 = vmatpush1.msra.mxu0 %v67
  %325 = vmatprep.subr.mxu0 0.0
  %326 = vmatpush1.msra.mxu0 %v64
  %327 = vmatprep.subr.mxu0 0.0
  %328 = vmatpush1.msra.mxu0 %v61
  %329 = vmatprep.subr.mxu0 0.0
  %330 = vmatpush1.msra.mxu0 %v58
  %331 = vmatprep.subr.mxu0 0.0
  %332 = vmatpush1.msra.mxu0 %v55
  %333 = vmatprep.subr.mxu0 0.0
  %334 = vmatpush1.msra.mxu0 %v52
  %335 = vmatprep.subr.mxu0 0.0
  %336 = vmatpush1.msra.mxu0 %v49
  %337 = vmatprep.subr.mxu0 0.0
  %338 = vmatpush1.msra.mxu0 %v46
  %339 = vmatprep.subr.mxu0 0.0
  %340 = vmatpush1.msra.mxu0 %v43
  %341 = vmatprep.subr.mxu0 0.0
  %342 = vmatpush1.msra.mxu0 %v40
  %343 = vmatprep.subr.mxu0 0.0
  %344 = vmatpush1.msra.mxu0 %v37
  %345 = vmatprep.subr.mxu0 0.0
  %346 = vmatpush1.msra.mxu0 %v34
  %347 = vmatprep.subr.mxu0 0.0
  %348 = vmatpush1.msra.mxu0 %v31
  %349 = vmatprep.subr.mxu0 0.0
  %350 = vmatpush1.msra.mxu0 %v28
  %351 = vmatprep.subr.mxu0 0.0
  %352 = vmatpush1.msra.mxu0 %v25
  %353 = vmatprep.subr.mxu0 0.0
  %354 = vmatpush2.msra.mxu0 0.0
  %355 = vmatprep.subr.mxu0 0.0
  %356 = vmatpush2.msra.mxu0 0.0
  %357 = vmatprep.subr.mxu0 0.0
  %358 = vmatpush2.msra.mxu0 0.0
  %359 = vmatprep.subr.mxu0 0.0
  %360 = vmatpush2.msra.mxu0 0.0
  %361 = vmatprep.subr.mxu0 0.0
  %362 = vmatpush2.msra.mxu0 0.0
  %363 = vmatprep.subr.mxu0 0.0
  %364 = vmatpush2.msra.mxu0 0.0
  %365 = vmatprep.subr.mxu0 0.0
  %366 = vmatpush2.msra.mxu0 0.0
  %367 = vmatprep.subr.mxu0 0.0
  %368 = vmatpush2.msra.mxu0 0.0
  %369 = vmatprep.subr.mxu0 0.0
  %370 = vmatpush2.msra.mxu0 0.0
  %371 = vmatprep.subr.mxu0 0.0
  %372 = vmatpush2.msra.mxu0 0.0
  %373 = vmatprep.subr.mxu0 0.0
  %374 = vmatpush2.msra.mxu0 0.0
  %375 = vmatprep.subr.mxu0 0.0
  %376 = vmatpush2.msra.mxu0 0.0
  %377 = vmatprep.subr.mxu0 0.0
  %378 = vmatpush2.msra.mxu0 0.0
  %379 = vmatprep.subr.mxu0 0.0
  %380 = vmatpush2.msra.mxu0 0.0
  %381 = vmatprep.subr.mxu0 0.0
  %382 = vmatpush2.msra.mxu0 0.0
  %383 = vmatprep.subr.mxu0 0.0
  %384 = vmatpush2.msra.mxu0 0.0
  %385 = vmatprep.mubr.f32.mxu0 0.0
  %386 = vmatmul.mubr.f32.gmra.mxu0 %v249
  %v387 = vpop.f32.mrf.mxu0
  %v388 = vadd.f32 0.0, %v387
  %v389 = vpop.f32.mrf.mxu0
  %390 = vdwg.mxu0
  %s391 = scalar_lea.vmem %s0, 12
  %v392 = vld [vmem:[%s391] sm:$0xff]
  %v393 = vld [vmem:[%s391 + $0x8] sm:$0xf]
  %v394 = vunpack.c.l.bf16 %v392
  %v395 = vunpack.c.h.bf16 %v392
  %v396 = vunpack.c.l.bf16 %v393
  %v397 = vadd.f32 %v394, %v317
  %v398 = vxor.u32 %v397, 2147483648
  %v399 = vmul.f32 %v398, 1.442695
  %v400 = vpow.pop %v399
  %v401 = vadd.f32 %v400, 1.0
  %v402 = vrcp.pop %v401
  %v403 = vmul.f32 1.0, %v402
  %v404 = vadd.f32 %v395, %v319
  %v405 = vxor.u32 %v404, 2147483648
  %v406 = vmul.f32 %v405, 1.442695
  %v407 = vpow.pop %v406
  %v408 = vadd.f32 %v407, 1.0
  %v409 = vrcp.pop %v408
  %v410 = vmul.f32 1.0, %v409
  %v411 = vadd.f32 %v388, %v76
  %v412 = vmul.f32 %v403, %v411
  %v413 = vadd.f32 %v396, %v412
  %v414 = vtanh.pop %v413
  %v415 = vsub.f32 %v249, %v414
  %v416 = vmul.f32 %v410, %v415
  %v417 = vadd.f32 %v414, %v416
  %418 = vst [vmem:[#allocation2] sm:$0xff] %v417
  %v419 = vpack.c.bf16 %v417, %v417
  %s420 = scalar_lea.vmem %s4, 4
  %421 = vst [vmem:[%s420] sm:$0xf] %v419
  %v422 = vld [vmem:[#allocation2] sm:$0xff]
  %423 = vmatprep.subr.mxu0 %v69
  %424 = vmatpush1.msra.mxu0 %v68
  %425 = vmatprep.subr.mxu0 %v66
  %426 = vmatpush1.msra.mxu0 %v65
  %427 = vmatprep.subr.mxu0 %v63
  %428 = vmatpush1.msra.mxu0 %v62
  %429 = vmatprep.subr.mxu0 %v60
  %430 = vmatpush1.msra.mxu0 %v59
  %431 = vmatprep.subr.mxu0 %v57
  %432 = vmatpush1.msra.mxu0 %v56
  %433 = vmatprep.subr.mxu0 %v54
  %434 = vmatpush1.msra.mxu0 %v53
  %435 = vmatprep.subr.mxu0 %v51
  %436 = vmatpush1.msra.mxu0 %v50
  %437 = vmatprep.subr.mxu0 %v48
  %438 = vmatpush1.msra.mxu0 %v47
  %439 = vmatprep.subr.mxu0 %v45
  %440 = vmatpush1.msra.mxu0 %v44
  %441 = vmatprep.subr.mxu0 %v42
  %442 = vmatpush1.msra.mxu0 %v41
  %443 = vmatprep.subr.mxu0 %v39
  %444 = vmatpush1.msra.mxu0 %v38
  %445 = vmatprep.subr.mxu0 %v36
  %446 = vmatpush1.msra.mxu0 %v35
  %447 = vmatprep.subr.mxu0 %v33
  %448 = vmatpush1.msra.mxu0 %v32
  %449 = vmatprep.subr.mxu0 %v30
  %450 = vmatpush1.msra.mxu0 %v29
  %451 = vmatprep.subr.mxu0 %v27
  %452 = vmatpush1.msra.mxu0 %v26
  %453 = vmatprep.subr.mxu0 %v24
  %454 = vmatpush1.msra.mxu0 %v23
  %455 = vmatprep.subr.mxu0 0.0
  %456 = vmatpush2.msra.mxu0 0.0
  %457 = vmatprep.subr.mxu0 0.0
  %458 = vmatpush2.msra.mxu0 0.0
  %459 = vmatprep.subr.mxu0 0.0
  %460 = vmatpush2.msra.mxu0 0.0
  %461 = vmatprep.subr.mxu0 0.0
  %462 = vmatpush2.msra.mxu0 0.0
  %463 = vmatprep.subr.mxu0 0.0
  %464 = vmatpush2.msra.mxu0 0.0
  %465 = vmatprep.subr.mxu0 0.0
  %466 = vmatpush2.msra.mxu0 0.0
  %467 = vmatprep.subr.mxu0 0.0
  %468 = vmatpush2.msra.mxu0 0.0
  %469 = vmatprep.subr.mxu0 0.0
  %470 = vmatpush2.msra.mxu0 0.0
  %471 = vmatprep.subr.mxu0 0.0
  %472 = vmatpush2.msra.mxu0 0.0
  %473 = vmatprep.subr.mxu0 0.0
  %474 = vmatpush2.msra.mxu0 0.0
  %475 = vmatprep.subr.mxu0 0.0
  %476 = vmatpush2.msra.mxu0 0.0
  %477 = vmatprep.subr.mxu0 0.0
  %478 = vmatpush2.msra.mxu0 0.0
  %479 = vmatprep.subr.mxu0 0.0
  %480 = vmatpush2.msra.mxu0 0.0
  %481 = vmatprep.subr.mxu0 0.0
  %482 = vmatpush2.msra.mxu0 0.0
  %483 = vmatprep.subr.mxu0 0.0
  %484 = vmatpush2.msra.mxu0 0.0
  %485 = vmatprep.subr.mxu0 0.0
  %486 = vmatpush2.msra.mxu0 0.0
  %487 = vmatprep.mubr.f32.mxu0 0.0
  %488 = vmatmul.mubr.f32.gmra.mxu0 %v422
  %v489 = vpop.f32.mrf.mxu0
  %v490 = vadd.f32 0.0, %v489
  %v491 = vpop.f32.mrf.mxu0
  %v492 = vadd.f32 0.0, %v491
  %493 = vdwg.mxu0
  %494 = vmatprep.subr.mxu0 0.0
  %495 = vmatpush1.msra.mxu0 %v70
  %496 = vmatprep.subr.mxu0 0.0
  %497 = vmatpush1.msra.mxu0 %v67
  %498 = vmatprep.subr.mxu0 0.0
  %499 = vmatpush1.msra.mxu0 %v64
  %500 = vmatprep.subr.mxu0 0.0
  %501 = vmatpush1.msra.mxu0 %v61
  %502 = vmatprep.subr.mxu0 0.0
  %503 = vmatpush1.msra.mxu0 %v58
  %504 = vmatprep.subr.mxu0 0.0
  %505 = vmatpush1.msra.mxu0 %v55
  %506 = vmatprep.subr.mxu0 0.0
  %507 = vmatpush1.msra.mxu0 %v52
  %508 = vmatprep.subr.mxu0 0.0
  %509 = vmatpush1.msra.mxu0 %v49
  %510 = vmatprep.subr.mxu0 0.0
  %511 = vmatpush1.msra.mxu0 %v46
  %512 = vmatprep.subr.mxu0 0.0
  %513 = vmatpush1.msra.mxu0 %v43
  %514 = vmatprep.subr.mxu0 0.0
  %515 = vmatpush1.msra.mxu0 %v40
  %516 = vmatprep.subr.mxu0 0.0
  %517 = vmatpush1.msra.mxu0 %v37
  %518 = vmatprep.subr.mxu0 0.0
  %519 = vmatpush1.msra.mxu0 %v34
  %520 = vmatprep.subr.mxu0 0.0
  %521 = vmatpush1.msra.mxu0 %v31
  %522 = vmatprep.subr.mxu0 0.0
  %523 = vmatpush1.msra.mxu0 %v28
  %524 = vmatprep.subr.mxu0 0.0
  %525 = vmatpush1.msra.mxu0 %v25
  %526 = vmatprep.subr.mxu0 0.0
  %527 = vmatpush2.msra.mxu0 0.0
  %528 = vmatprep.subr.mxu0 0.0
  %529 = vmatpush2.msra.mxu0 0.0
  %530 = vmatprep.subr.mxu0 0.0
  %531 = vmatpush2.msra.mxu0 0.0
  %532 = vmatprep.subr.mxu0 0.0
  %533 = vmatpush2.msra.mxu0 0.0
  %534 = vmatprep.subr.mxu0 0.0
  %535 = vmatpush2.msra.mxu0 0.0
  %536 = vmatprep.subr.mxu0 0.0
  %537 = vmatpush2.msra.mxu0 0.0
  %538 = vmatprep.subr.mxu0 0.0
  %539 = vmatpush2.msra.mxu0 0.0
  %540 = vmatprep.subr.mxu0 0.0
  %541 = vmatpush2.msra.mxu0 0.0
  %542 = vmatprep.subr.mxu0 0.0
  %543 = vmatpush2.msra.mxu0 0.0
  %544 = vmatprep.subr.mxu0 0.0
  %545 = vmatpush2.msra.mxu0 0.0
  %546 = vmatprep.subr.mxu0 0.0
  %547 = vmatpush2.msra.mxu0 0.0
  %548 = vmatprep.subr.mxu0 0.0
  %549 = vmatpush2.msra.mxu0 0.0
  %550 = vmatprep.subr.mxu0 0.0
  %551 = vmatpush2.msra.mxu0 0.0
  %552 = vmatprep.subr.mxu0 0.0
  %553 = vmatpush2.msra.mxu0 0.0
  %554 = vmatprep.subr.mxu0 0.0
  %555 = vmatpush2.msra.mxu0 0.0
  %556 = vmatprep.subr.mxu0 0.0
  %557 = vmatpush2.msra.mxu0 0.0
  %558 = vmatprep.mubr.f32.mxu0 0.0
  %559 = vmatmul.mubr.f32.gmra.mxu0 %v422
  %v560 = vpop.f32.mrf.mxu0
  %v561 = vadd.f32 0.0, %v560
  %v562 = vpop.f32.mrf.mxu0
  %563 = vdwg.mxu0
  %s564 = scalar_lea.vmem %s0, 24
  %v565 = vld [vmem:[%s564] sm:$0xff]
  %v566 = vld [vmem:[%s564 + $0x8] sm:$0xf]
  %v567 = vunpack.c.l.bf16 %v565
  %v568 = vunpack.c.h.bf16 %v565
  %v569 = vunpack.c.l.bf16 %v566
  %v570 = vadd.f32 %v567, %v490
  %v571 = vxor.u32 %v570, 2147483648
  %v572 = vmul.f32 %v571, 1.442695
  %v573 = vpow.pop %v572
  %v574 = vadd.f32 %v573, 1.0
  %v575 = vrcp.pop %v574
  %v576 = vmul.f32 1.0, %v575
  %v577 = vadd.f32 %v568, %v492
  %v578 = vxor.u32 %v577, 2147483648
  %v579 = vmul.f32 %v578, 1.442695
  %v580 = vpow.pop %v579
  %v581 = vadd.f32 %v580, 1.0
  %v582 = vrcp.pop %v581
  %v583 = vmul.f32 1.0, %v582
  %v584 = vadd.f32 %v561, %v76
  %v585 = vmul.f32 %v576, %v584
  %v586 = vadd.f32 %v569, %v585
  %v587 = vtanh.pop %v586
  %v588 = vsub.f32 %v422, %v587
  %v589 = vmul.f32 %v583, %v588
  %v590 = vadd.f32 %v587, %v589
  %591 = vst [vmem:[#allocation2] sm:$0xff] %v590
  %v592 = vpack.c.bf16 %v590, %v590
  %s593 = scalar_lea.vmem %s4, 8
  %594 = vst [vmem:[%s593] sm:$0xf] %v592
  %v595 = vld [vmem:[#allocation2] sm:$0xff]
  %596 = vmatprep.subr.mxu0 %v69
  %597 = vmatpush1.msra.mxu0 %v68
  %598 = vmatprep.subr.mxu0 %v66
  %599 = vmatpush1.msra.mxu0 %v65
  %600 = vmatprep.subr.mxu0 %v63
  %601 = vmatpush1.msra.mxu0 %v62
  %602 = vmatprep.subr.mxu0 %v60
  %603 = vmatpush1.msra.mxu0 %v59
  %604 = vmatprep.subr.mxu0 %v57
  %605 = vmatpush1.msra.mxu0 %v56
  %606 = vmatprep.subr.mxu0 %v54
  %607 = vmatpush1.msra.mxu0 %v53
  %608 = vmatprep.subr.mxu0 %v51
  %609 = vmatpush1.msra.mxu0 %v50
  %610 = vmatprep.subr.mxu0 %v48
  %611 = vmatpush1.msra.mxu0 %v47
  %612 = vmatprep.subr.mxu0 %v45
  %613 = vmatpush1.msra.mxu0 %v44
  %614 = vmatprep.subr.mxu0 %v42
  %615 = vmatpush1.msra.mxu0 %v41
  %616 = vmatprep.subr.mxu0 %v39
  %617 = vmatpush1.msra.mxu0 %v38
  %618 = vmatprep.subr.mxu0 %v36
  %619 = vmatpush1.msra.mxu0 %v35
  %620 = vmatprep.subr.mxu0 %v33
  %621 = vmatpush1.msra.mxu0 %v32
  %622 = vmatprep.subr.mxu0 %v30
  %623 = vmatpush1.msra.mxu0 %v29
  %624 = vmatprep.subr.mxu0 %v27
  %625 = vmatpush1.msra.mxu0 %v26
  %626 = vmatprep.subr.mxu0 %v24
  %627 = vmatpush1.msra.mxu0 %v23
  %628 = vmatprep.subr.mxu0 0.0
  %629 = vmatpush2.msra.mxu0 0.0
  %630 = vmatprep.subr.mxu0 0.0
  %631 = vmatpush2.msra.mxu0 0.0
  %632 = vmatprep.subr.mxu0 0.0
  %633 = vmatpush2.msra.mxu0 0.0
  %634 = vmatprep.subr.mxu0 0.0
  %635 = vmatpush2.msra.mxu0 0.0
  %636 = vmatprep.subr.mxu0 0.0
  %637 = vmatpush2.msra.mxu0 0.0
  %638 = vmatprep.subr.mxu0 0.0
  %639 = vmatpush2.msra.mxu0 0.0
  %640 = vmatprep.subr.mxu0 0.0
  %641 = vmatpush2.msra.mxu0 0.0
  %642 = vmatprep.subr.mxu0 0.0
  %643 = vmatpush2.msra.mxu0 0.0
  %644 = vmatprep.subr.mxu0 0.0
  %645 = vmatpush2.msra.mxu0 0.0
  %646 = vmatprep.subr.mxu0 0.0
  %647 = vmatpush2.msra.mxu0 0.0
  %648 = vmatprep.subr.mxu0 0.0
  %649 = vmatpush2.msra.mxu0 0.0
  %650 = vmatprep.subr.mxu0 0.0
  %651 = vmatpush2.msra.mxu0 0.0
  %652 = vmatprep.subr.mxu0 0.0
  %653 = vmatpush2.msra.mxu0 0.0
  %654 = vmatprep.subr.mxu0 0.0
  %655 = vmatpush2.msra.mxu0 0.0
  %656 = vmatprep.subr.mxu0 0.0
  %657 = vmatpush2.msra.mxu0 0.0
  %658 = vmatprep.subr.mxu0 0.0
  %659 = vmatpush2.msra.mxu0 0.0
  %660 = vmatprep.mubr.f32.mxu0 0.0
  %661 = vmatmul.mubr.f32.gmra.mxu0 %v595
  %v662 = vpop.f32.mrf.mxu0
  %v663 = vadd.f32 0.0, %v662
  %v664 = vpop.f32.mrf.mxu0
  %v665 = vadd.f32 0.0, %v664
  %666 = vdwg.mxu0
  %667 = vmatprep.subr.mxu0 0.0
  %668 = vmatpush1.msra.mxu0 %v70
  %669 = vmatprep.subr.mxu0 0.0
  %670 = vmatpush1.msra.mxu0 %v67
  %671 = vmatprep.subr.mxu0 0.0
  %672 = vmatpush1.msra.mxu0 %v64
  %673 = vmatprep.subr.mxu0 0.0
  %674 = vmatpush1.msra.mxu0 %v61
  %675 = vmatprep.subr.mxu0 0.0
  %676 = vmatpush1.msra.mxu0 %v58
  %677 = vmatprep.subr.mxu0 0.0
  %678 = vmatpush1.msra.mxu0 %v55
  %679 = vmatprep.subr.mxu0 0.0
  %680 = vmatpush1.msra.mxu0 %v52
  %681 = vmatprep.subr.mxu0 0.0
  %682 = vmatpush1.msra.mxu0 %v49
  %683 = vmatprep.subr.mxu0 0.0
  %684 = vmatpush1.msra.mxu0 %v46
  %685 = vmatprep.subr.mxu0 0.0
  %686 = vmatpush1.msra.mxu0 %v43
  %687 = vmatprep.subr.mxu0 0.0
  %688 = vmatpush1.msra.mxu0 %v40
  %689 = vmatprep.subr.mxu0 0.0
  %690 = vmatpush1.msra.mxu0 %v37
  %691 = vmatprep.subr.mxu0 0.0
  %692 = vmatpush1.msra.mxu0 %v34
  %693 = vmatprep.subr.mxu0 0.0
  %694 = vmatpush1.msra.mxu0 %v31
  %695 = vmatprep.subr.mxu0 0.0
  %696 = vmatpush1.msra.mxu0 %v28
  %697 = vmatprep.subr.mxu0 0.0
  %698 = vmatpush1.msra.mxu0 %v25
  %699 = vmatprep.subr.mxu0 0.0
  %700 = vmatpush2.msra.mxu0 0.0
  %701 = vmatprep.subr.mxu0 0.0
  %702 = vmatpush2.msra.mxu0 0.0
  %703 = vmatprep.subr.mxu0 0.0
  %704 = vmatpush2.msra.mxu0 0.0
  %705 = vmatprep.subr.mxu0 0.0
  %706 = vmatpush2.msra.mxu0 0.0
  %707 = vmatprep.subr.mxu0 0.0
  %708 = vmatpush2.msra.mxu0 0.0
  %709 = vmatprep.subr.mxu0 0.0
  %710 = vmatpush2.msra.mxu0 0.0
  %711 = vmatprep.subr.mxu0 0.0
  %712 = vmatpush2.msra.mxu0 0.0
  %713 = vmatprep.subr.mxu0 0.0
  %714 = vmatpush2.msra.mxu0 0.0
  %715 = vmatprep.subr.mxu0 0.0
  %716 = vmatpush2.msra.mxu0 0.0
  %717 = vmatprep.subr.mxu0 0.0
  %718 = vmatpush2.msra.mxu0 0.0
  %719 = vmatprep.subr.mxu0 0.0
  %720 = vmatpush2.msra.mxu0 0.0
  %721 = vmatprep.subr.mxu0 0.0
  %722 = vmatpush2.msra.mxu0 0.0
  %723 = vmatprep.subr.mxu0 0.0
  %724 = vmatpush2.msra.mxu0 0.0
  %725 = vmatprep.subr.mxu0 0.0
  %726 = vmatpush2.msra.mxu0 0.0
  %727 = vmatprep.subr.mxu0 0.0
  %728 = vmatpush2.msra.mxu0 0.0
  %729 = vmatprep.subr.mxu0 0.0
  %730 = vmatpush2.msra.mxu0 0.0
  %731 = vmatprep.mubr.f32.mxu0 0.0
  %732 = vmatmul.mubr.f32.gmra.mxu0 %v595
  %v733 = vpop.f32.mrf.mxu0
  %v734 = vadd.f32 0.0, %v733
  %v735 = vpop.f32.mrf.mxu0
  %736 = vdwg.mxu0
  %s737 = scalar_lea.vmem %s0, 36
  %v738 = vld [vmem:[%s737] sm:$0xff]
  %v739 = vld [vmem:[%s737 + $0x8] sm:$0xf]
  %v740 = vunpack.c.l.bf16 %v738
  %v741 = vunpack.c.h.bf16 %v738
  %v742 = vunpack.c.l.bf16 %v739
  %v743 = vadd.f32 %v740, %v663
  %v744 = vxor.u32 %v743, 2147483648
  %v745 = vmul.f32 %v744, 1.442695
  %v746 = vpow.pop %v745
  %v747 = vadd.f32 %v746, 1.0
  %v748 = vrcp.pop %v747
  %v749 = vmul.f32 1.0, %v748
  %v750 = vadd.f32 %v741, %v665
  %v751 = vxor.u32 %v750, 2147483648
  %v752 = vmul.f32 %v751, 1.442695
  %v753 = vpow.pop %v752
  %v754 = vadd.f32 %v753, 1.0
  %v755 = vrcp.pop %v754
  %v756 = vmul.f32 1.0, %v755
  %v757 = vadd.f32 %v734, %v76
  %v758 = vmul.f32 %v749, %v757
  %v759 = vadd.f32 %v742, %v758
  %v760 = vtanh.pop %v759
  %v761 = vsub.f32 %v595, %v760
  %v762 = vmul.f32 %v756, %v761
  %v763 = vadd.f32 %v760, %v762
  %764 = vst [vmem:[#allocation2] sm:$0xff] %v763
  %v765 = vpack.c.bf16 %v763, %v763
  %s766 = scalar_lea.vmem %s4, 12
  %767 = vst [vmem:[%s766] sm:$0xf] %v765
  %v768 = vld [vmem:[#allocation2] sm:$0xff]
  %769 = vmatprep.subr.mxu0 %v69
  %770 = vmatpush1.msra.mxu0 %v68
  %771 = vmatprep.subr.mxu0 %v66
  %772 = vmatpush1.msra.mxu0 %v65
  %773 = vmatprep.subr.mxu0 %v63
  %774 = vmatpush1.msra.mxu0 %v62
  %775 = vmatprep.subr.mxu0 %v60
  %776 = vmatpush1.msra.mxu0 %v59
  %777 = vmatprep.subr.mxu0 %v57
  %778 = vmatpush1.msra.mxu0 %v56
  %779 = vmatprep.subr.mxu0 %v54
  %780 = vmatpush1.msra.mxu0 %v53
  %781 = vmatprep.subr.mxu0 %v51
  %782 = vmatpush1.msra.mxu0 %v50
  %783 = vmatprep.subr.mxu0 %v48
  %784 = vmatpush1.msra.mxu0 %v47
  %785 = vmatprep.subr.mxu0 %v45
  %786 = vmatpush1.msra.mxu0 %v44
  %787 = vmatprep.subr.mxu0 %v42
  %788 = vmatpush1.msra.mxu0 %v41
  %789 = vmatprep.subr.mxu0 %v39
  %790 = vmatpush1.msra.mxu0 %v38
  %791 = vmatprep.subr.mxu0 %v36
  %792 = vmatpush1.msra.mxu0 %v35
  %793 = vmatprep.subr.mxu0 %v33
  %794 = vmatpush1.msra.mxu0 %v32
  %795 = vmatprep.subr.mxu0 %v30
  %796 = vmatpush1.msra.mxu0 %v29
  %797 = vmatprep.subr.mxu0 %v27
  %798 = vmatpush1.msra.mxu0 %v26
  %799 = vmatprep.subr.mxu0 %v24
  %800 = vmatpush1.msra.mxu0 %v23
  %801 = vmatprep.subr.mxu0 0.0
  %802 = vmatpush2.msra.mxu0 0.0
  %803 = vmatprep.subr.mxu0 0.0
  %804 = vmatpush2.msra.mxu0 0.0
  %805 = vmatprep.subr.mxu0 0.0
  %806 = vmatpush2.msra.mxu0 0.0
  %807 = vmatprep.subr.mxu0 0.0
  %808 = vmatpush2.msra.mxu0 0.0
  %809 = vmatprep.subr.mxu0 0.0
  %810 = vmatpush2.msra.mxu0 0.0
  %811 = vmatprep.subr.mxu0 0.0
  %812 = vmatpush2.msra.mxu0 0.0
  %813 = vmatprep.subr.mxu0 0.0
  %814 = vmatpush2.msra.mxu0 0.0
  %815 = vmatprep.subr.mxu0 0.0
  %816 = vmatpush2.msra.mxu0 0.0
  %817 = vmatprep.subr.mxu0 0.0
  %818 = vmatpush2.msra.mxu0 0.0
  %819 = vmatprep.subr.mxu0 0.0
  %820 = vmatpush2.msra.mxu0 0.0
  %821 = vmatprep.subr.mxu0 0.0
  %822 = vmatpush2.msra.mxu0 0.0
  %823 = vmatprep.subr.mxu0 0.0
  %824 = vmatpush2.msra.mxu0 0.0
  %825 = vmatprep.subr.mxu0 0.0
  %826 = vmatpush2.msra.mxu0 0.0
  %827 = vmatprep.subr.mxu0 0.0
  %828 = vmatpush2.msra.mxu0 0.0
  %829 = vmatprep.subr.mxu0 0.0
  %830 = vmatpush2.msra.mxu0 0.0
  %831 = vmatprep.subr.mxu0 0.0
  %832 = vmatpush2.msra.mxu0 0.0
  %833 = vmatprep.mubr.f32.mxu0 0.0
  %834 = vmatmul.mubr.f32.gmra.mxu0 %v768
  %v835 = vpop.f32.mrf.mxu0
  %v836 = vadd.f32 0.0, %v835
  %v837 = vpop.f32.mrf.mxu0
  %v838 = vadd.f32 0.0, %v837
  %839 = vdwg.mxu0
  %840 = vmatprep.subr.mxu0 0.0
  %841 = vmatpush1.msra.mxu0 %v70
  %842 = vmatprep.subr.mxu0 0.0
  %843 = vmatpush1.msra.mxu0 %v67
  %844 = vmatprep.subr.mxu0 0.0
  %845 = vmatpush1.msra.mxu0 %v64
  %846 = vmatprep.subr.mxu0 0.0
  %847 = vmatpush1.msra.mxu0 %v61
  %848 = vmatprep.subr.mxu0 0.0
  %849 = vmatpush1.msra.mxu0 %v58
  %850 = vmatprep.subr.mxu0 0.0
  %851 = vmatpush1.msra.mxu0 %v55
  %852 = vmatprep.subr.mxu0 0.0
  %853 = vmatpush1.msra.mxu0 %v52
  %854 = vmatprep.subr.mxu0 0.0
  %855 = vmatpush1.msra.mxu0 %v49
  %856 = vmatprep.subr.mxu0 0.0
  %857 = vmatpush1.msra.mxu0 %v46
  %858 = vmatprep.subr.mxu0 0.0
  %859 = vmatpush1.msra.mxu0 %v43
  %860 = vmatprep.subr.mxu0 0.0
  %861 = vmatpush1.msra.mxu0 %v40
  %862 = vmatprep.subr.mxu0 0.0
  %863 = vmatpush1.msra.mxu0 %v37
  %864 = vmatprep.subr.mxu0 0.0
  %865 = vmatpush1.msra.mxu0 %v34
  %866 = vmatprep.subr.mxu0 0.0
  %867 = vmatpush1.msra.mxu0 %v31
  %868 = vmatprep.subr.mxu0 0.0
  %869 = vmatpush1.msra.mxu0 %v28
  %870 = vmatprep.subr.mxu0 0.0
  %871 = vmatpush1.msra.mxu0 %v25
  %872 = vmatprep.subr.mxu0 0.0
  %873 = vmatpush2.msra.mxu0 0.0
  %874 = vmatprep.subr.mxu0 0.0
  %875 = vmatpush2.msra.mxu0 0.0
  %876 = vmatprep.subr.mxu0 0.0
  %877 = vmatpush2.msra.mxu0 0.0
  %878 = vmatprep.subr.mxu0 0.0
  %879 = vmatpush2.msra.mxu0 0.0
  %880 = vmatprep.subr.mxu0 0.0
  %881 = vmatpush2.msra.mxu0 0.0
  %882 = vmatprep.subr.mxu0 0.0
  %883 = vmatpush2.msra.mxu0 0.0
  %884 = vmatprep.subr.mxu0 0.0
  %885 = vmatpush2.msra.mxu0 0.0
  %886 = vmatprep.subr.mxu0 0.0
  %887 = vmatpush2.msra.mxu0 0.0
  %888 = vmatprep.subr.mxu0 0.0
  %889 = vmatpush2.msra.mxu0 0.0
  %890 = vmatprep.subr.mxu0 0.0
  %891 = vmatpush2.msra.mxu0 0.0
  %892 = vmatprep.subr.mxu0 0.0
  %893 = vmatpush2.msra.mxu0 0.0
  %894 = vmatprep.subr.mxu0 0.0
  %895 = vmatpush2.msra.mxu0 0.0
  %896 = vmatprep.subr.mxu0 0.0
  %897 = vmatpush2.msra.mxu0 0.0
  %898 = vmatprep.subr.mxu0 0.0
  %899 = vmatpush2.msra.mxu0 0.0
  %900 = vmatprep.subr.mxu0 0.0
  %901 = vmatpush2.msra.mxu0 0.0
  %902 = vmatprep.subr.mxu0 0.0
  %903 = vmatpush2.msra.mxu0 0.0
  %904 = vmatprep.mubr.f32.mxu0 0.0
  %905 = vmatmul.mubr.f32.gmra.mxu0 %v768
  %v906 = vpop.f32.mrf.mxu0
  %v907 = vadd.f32 0.0, %v906
  %v908 = vpop.f32.mrf.mxu0
  %909 = vdwg.mxu0
  %s910 = scalar_lea.vmem %s0, 48
  %v911 = vld [vmem:[%s910] sm:$0xff]
  %v912 = vld [vmem:[%s910 + $0x8] sm:$0xf]
  %v913 = vunpack.c.l.bf16 %v911
  %v914 = vunpack.c.h.bf16 %v911
  %v915 = vunpack.c.l.bf16 %v912
  %v916 = vadd.f32 %v913, %v836
  %v917 = vxor.u32 %v916, 2147483648
  %v918 = vmul.f32 %v917, 1.442695
  %v919 = vpow.pop %v918
  %v920 = vadd.f32 %v919, 1.0
  %v921 = vrcp.pop %v920
  %v922 = vmul.f32 1.0, %v921
  %v923 = vadd.f32 %v914, %v838
  %v924 = vxor.u32 %v923, 2147483648
  %v925 = vmul.f32 %v924, 1.442695
  %v926 = vpow.pop %v925
  %v927 = vadd.f32 %v926, 1.0
  %v928 = vrcp.pop %v927
  %v929 = vmul.f32 1.0, %v928
  %v930 = vadd.f32 %v907, %v76
  %v931 = vmul.f32 %v922, %v930
  %v932 = vadd.f32 %v915, %v931
  %v933 = vtanh.pop %v932
  %v934 = vsub.f32 %v768, %v933
  %v935 = vmul.f32 %v929, %v934
  %v936 = vadd.f32 %v933, %v935
  %937 = vst [vmem:[#allocation2] sm:$0xff] %v936
  %v938 = vpack.c.bf16 %v936, %v936
  %s939 = scalar_lea.vmem %s4, 16
  %940 = vst [vmem:[%s939] sm:$0xf] %v938
  %v941 = vld [vmem:[#allocation2] sm:$0xff]
  %942 = vmatprep.subr.mxu0 %v69
  %943 = vmatpush1.msra.mxu0 %v68
  %944 = vmatprep.subr.mxu0 %v66
  %945 = vmatpush1.msra.mxu0 %v65
  %946 = vmatprep.subr.mxu0 %v63
  %947 = vmatpush1.msra.mxu0 %v62
  %948 = vmatprep.subr.mxu0 %v60
  %949 = vmatpush1.msra.mxu0 %v59
  %950 = vmatprep.subr.mxu0 %v57
  %951 = vmatpush1.msra.mxu0 %v56
  %952 = vmatprep.subr.mxu0 %v54
  %953 = vmatpush1.msra.mxu0 %v53
  %954 = vmatprep.subr.mxu0 %v51
  %955 = vmatpush1.msra.mxu0 %v50
  %956 = vmatprep.subr.mxu0 %v48
  %957 = vmatpush1.msra.mxu0 %v47
  %958 = vmatprep.subr.mxu0 %v45
  %959 = vmatpush1.msra.mxu0 %v44
  %960 = vmatprep.subr.mxu0 %v42
  %961 = vmatpush1.msra.mxu0 %v41
  %962 = vmatprep.subr.mxu0 %v39
  %963 = vmatpush1.msra.mxu0 %v38
  %964 = vmatprep.subr.mxu0 %v36
  %965 = vmatpush1.msra.mxu0 %v35
  %966 = vmatprep.subr.mxu0 %v33
  %967 = vmatpush1.msra.mxu0 %v32
  %968 = vmatprep.subr.mxu0 %v30
  %969 = vmatpush1.msra.mxu0 %v29
  %970 = vmatprep.subr.mxu0 %v27
  %971 = vmatpush1.msra.mxu0 %v26
  %972 = vmatprep.subr.mxu0 %v24
  %973 = vmatpush1.msra.mxu0 %v23
  %974 = vmatprep.subr.mxu0 0.0
  %975 = vmatpush2.msra.mxu0 0.0
  %976 = vmatprep.subr.mxu0 0.0
  %977 = vmatpush2.msra.mxu0 0.0
  %978 = vmatprep.subr.mxu0 0.0
  %979 = vmatpush2.msra.mxu0 0.0
  %980 = vmatprep.subr.mxu0 0.0
  %981 = vmatpush2.msra.mxu0 0.0
  %982 = vmatprep.subr.mxu0 0.0
  %983 = vmatpush2.msra.mxu0 0.0
  %984 = vmatprep.subr.mxu0 0.0
  %985 = vmatpush2.msra.mxu0 0.0
  %986 = vmatprep.subr.mxu0 0.0
  %987 = vmatpush2.msra.mxu0 0.0
  %988 = vmatprep.subr.mxu0 0.0
  %989 = vmatpush2.msra.mxu0 0.0
  %990 = vmatprep.subr.mxu0 0.0
  %991 = vmatpush2.msra.mxu0 0.0
  %992 = vmatprep.subr.mxu0 0.0
  %993 = vmatpush2.msra.mxu0 0.0
  %994 = vmatprep.subr.mxu0 0.0
  %995 = vmatpush2.msra.mxu0 0.0
  %996 = vmatprep.subr.mxu0 0.0
  %997 = vmatpush2.msra.mxu0 0.0
  %998 = vmatprep.subr.mxu0 0.0
  %999 = vmatpush2.msra.mxu0 0.0
  %1000 = vmatprep.subr.mxu0 0.0
  %1001 = vmatpush2.msra.mxu0 0.0
  %1002 = vmatprep.subr.mxu0 0.0
  %1003 = vmatpush2.msra.mxu0 0.0
  %1004 = vmatprep.subr.mxu0 0.0
  %1005 = vmatpush2.msra.mxu0 0.0
  %1006 = vmatprep.mubr.f32.mxu0 0.0
  %1007 = vmatmul.mubr.f32.gmra.mxu0 %v941
  %v1008 = vpop.f32.mrf.mxu0
  %v1009 = vadd.f32 0.0, %v1008
  %v1010 = vpop.f32.mrf.mxu0
  %v1011 = vadd.f32 0.0, %v1010
  %1012 = vdwg.mxu0
  %1013 = vmatprep.subr.mxu0 0.0
  %1014 = vmatpush1.msra.mxu0 %v70
  %1015 = vmatprep.subr.mxu0 0.0
  %1016 = vmatpush1.msra.mxu0 %v67
  %1017 = vmatprep.subr.mxu0 0.0
  %1018 = vmatpush1.msra.mxu0 %v64
  %1019 = vmatprep.subr.mxu0 0.0
  %1020 = vmatpush1.msra.mxu0 %v61
  %1021 = vmatprep.subr.mxu0 0.0
  %1022 = vmatpush1.msra.mxu0 %v58
  %1023 = vmatprep.subr.mxu0 0.0
  %1024 = vmatpush1.msra.mxu0 %v55
  %1025 = vmatprep.subr.mxu0 0.0
  %1026 = vmatpush1.msra.mxu0 %v52
  %1027 = vmatprep.subr.mxu0 0.0
  %1028 = vmatpush1.msra.mxu0 %v49
  %1029 = vmatprep.subr.mxu0 0.0
  %1030 = vmatpush1.msra.mxu0 %v46
  %1031 = vmatprep.subr.mxu0 0.0
  %1032 = vmatpush1.msra.mxu0 %v43
  %1033 = vmatprep.subr.mxu0 0.0
  %1034 = vmatpush1.msra.mxu0 %v40
  %1035 = vmatprep.subr.mxu0 0.0
  %1036 = vmatpush1.msra.mxu0 %v37
  %1037 = vmatprep.subr.mxu0 0.0
  %1038 = vmatpush1.msra.mxu0 %v34
  %1039 = vmatprep.subr.mxu0 0.0
  %1040 = vmatpush1.msra.mxu0 %v31
  %1041 = vmatprep.subr.mxu0 0.0
  %1042 = vmatpush1.msra.mxu0 %v28
  %1043 = vmatprep.subr.mxu0 0.0
  %1044 = vmatpush1.msra.mxu0 %v25
  %1045 = vmatprep.subr.mxu0 0.0
  %1046 = vmatpush2.msra.mxu0 0.0
  %1047 = vmatprep.subr.mxu0 0.0
  %1048 = vmatpush2.msra.mxu0 0.0
  %1049 = vmatprep.subr.mxu0 0.0
  %1050 = vmatpush2.msra.mxu0 0.0
  %1051 = vmatprep.subr.mxu0 0.0
  %1052 = vmatpush2.msra.mxu0 0.0
  %1053 = vmatprep.subr.mxu0 0.0
  %1054 = vmatpush2.msra.mxu0 0.0
  %1055 = vmatprep.subr.mxu0 0.0
  %1056 = vmatpush2.msra.mxu0 0.0
  %1057 = vmatprep.subr.mxu0 0.0
  %1058 = vmatpush2.msra.mxu0 0.0
  %1059 = vmatprep.subr.mxu0 0.0
  %1060 = vmatpush2.msra.mxu0 0.0
  %1061 = vmatprep.subr.mxu0 0.0
  %1062 = vmatpush2.msra.mxu0 0.0
  %1063 = vmatprep.subr.mxu0 0.0
  %1064 = vmatpush2.msra.mxu0 0.0
  %1065 = vmatprep.subr.mxu0 0.0
  %1066 = vmatpush2.msra.mxu0 0.0
  %1067 = vmatprep.subr.mxu0 0.0
  %1068 = vmatpush2.msra.mxu0 0.0
  %1069 = vmatprep.subr.mxu0 0.0
  %1070 = vmatpush2.msra.mxu0 0.0
  %1071 = vmatprep.subr.mxu0 0.0
  %1072 = vmatpush2.msra.mxu0 0.0
  %1073 = vmatprep.subr.mxu0 0.0
  %1074 = vmatpush2.msra.mxu0 0.0
  %1075 = vmatprep.subr.mxu0 0.0
  %1076 = vmatpush2.msra.mxu0 0.0
  %1077 = vmatprep.mubr.f32.mxu0 0.0
  %1078 = vmatmul.mubr.f32.gmra.mxu0 %v941
  %v1079 = vpop.f32.mrf.mxu0
  %v1080 = vadd.f32 0.0, %v1079
  %v1081 = vpop.f32.mrf.mxu0
  %1082 = vdwg.mxu0
  %s1083 = scalar_lea.vmem %s0, 60
  %v1084 = vld [vmem:[%s1083] sm:$0xff]
  %v1085 = vld [vmem:[%s1083 + $0x8] sm:$0xf]
  %v1086 = vunpack.c.l.bf16 %v1084
  %v1087 = vunpack.c.h.bf16 %v1084
  %v1088 = vunpack.c.l.bf16 %v1085
  %v1089 = vadd.f32 %v1086, %v1009
  %v1090 = vxor.u32 %v1089, 2147483648
  %v1091 = vmul.f32 %v1090, 1.442695
  %v1092 = vpow.pop %v1091
  %v1093 = vadd.f32 %v1092, 1.0
  %v1094 = vrcp.pop %v1093
  %v1095 = vmul.f32 1.0, %v1094
  %v1096 = vadd.f32 %v1087, %v1011
  %v1097 = vxor.u32 %v1096, 2147483648
  %v1098 = vmul.f32 %v1097, 1.442695
  %v1099 = vpow.pop %v1098
  %v1100 = vadd.f32 %v1099, 1.0
  %v1101 = vrcp.pop %v1100
  %v1102 = vmul.f32 1.0, %v1101
  %v1103 = vadd.f32 %v1080, %v76
  %v1104 = vmul.f32 %v1095, %v1103
  %v1105 = vadd.f32 %v1088, %v1104
  %v1106 = vtanh.pop %v1105
  %v1107 = vsub.f32 %v941, %v1106
  %v1108 = vmul.f32 %v1102, %v1107
  %v1109 = vadd.f32 %v1106, %v1108
  %1110 = vst [vmem:[#allocation2] sm:$0xff] %v1109
  %v1111 = vpack.c.bf16 %v1109, %v1109
  %s1112 = scalar_lea.vmem %s4, 20
  %1113 = vst [vmem:[%s1112] sm:$0xf] %v1111
  %v1114 = vld [vmem:[#allocation2] sm:$0xff]
  %1115 = vmatprep.subr.mxu0 %v69
  %1116 = vmatpush1.msra.mxu0 %v68
  %1117 = vmatprep.subr.mxu0 %v66
  %1118 = vmatpush1.msra.mxu0 %v65
  %1119 = vmatprep.subr.mxu0 %v63
  %1120 = vmatpush1.msra.mxu0 %v62
  %1121 = vmatprep.subr.mxu0 %v60
  %1122 = vmatpush1.msra.mxu0 %v59
  %1123 = vmatprep.subr.mxu0 %v57
  %1124 = vmatpush1.msra.mxu0 %v56
  %1125 = vmatprep.subr.mxu0 %v54
  %1126 = vmatpush1.msra.mxu0 %v53
  %1127 = vmatprep.subr.mxu0 %v51
  %1128 = vmatpush1.msra.mxu0 %v50
  %1129 = vmatprep.subr.mxu0 %v48
  %1130 = vmatpush1.msra.mxu0 %v47
  %1131 = vmatprep.subr.mxu0 %v45
  %1132 = vmatpush1.msra.mxu0 %v44
  %1133 = vmatprep.subr.mxu0 %v42
  %1134 = vmatpush1.msra.mxu0 %v41
  %1135 = vmatprep.subr.mxu0 %v39
  %1136 = vmatpush1.msra.mxu0 %v38
  %1137 = vmatprep.subr.mxu0 %v36
  %1138 = vmatpush1.msra.mxu0 %v35
  %1139 = vmatprep.subr.mxu0 %v33
  %1140 = vmatpush1.msra.mxu0 %v32
  %1141 = vmatprep.subr.mxu0 %v30
  %1142 = vmatpush1.msra.mxu0 %v29
  %1143 = vmatprep.subr.mxu0 %v27
  %1144 = vmatpush1.msra.mxu0 %v26
  %1145 = vmatprep.subr.mxu0 %v24
  %1146 = vmatpush1.msra.mxu0 %v23
  %1147 = vmatprep.subr.mxu0 0.0
  %1148 = vmatpush2.msra.mxu0 0.0
  %1149 = vmatprep.subr.mxu0 0.0
  %1150 = vmatpush2.msra.mxu0 0.0
  %1151 = vmatprep.subr.mxu0 0.0
  %1152 = vmatpush2.msra.mxu0 0.0
  %1153 = vmatprep.subr.mxu0 0.0
  %1154 = vmatpush2.msra.mxu0 0.0
  %1155 = vmatprep.subr.mxu0 0.0
  %1156 = vmatpush2.msra.mxu0 0.0
  %1157 = vmatprep.subr.mxu0 0.0
  %1158 = vmatpush2.msra.mxu0 0.0
  %1159 = vmatprep.subr.mxu0 0.0
  %1160 = vmatpush2.msra.mxu0 0.0
  %1161 = vmatprep.subr.mxu0 0.0
  %1162 = vmatpush2.msra.mxu0 0.0
  %1163 = vmatprep.subr.mxu0 0.0
  %1164 = vmatpush2.msra.mxu0 0.0
  %1165 = vmatprep.subr.mxu0 0.0
  %1166 = vmatpush2.msra.mxu0 0.0
  %1167 = vmatprep.subr.mxu0 0.0
  %1168 = vmatpush2.msra.mxu0 0.0
  %1169 = vmatprep.subr.mxu0 0.0
  %1170 = vmatpush2.msra.mxu0 0.0
  %1171 = vmatprep.subr.mxu0 0.0
  %1172 = vmatpush2.msra.mxu0 0.0
  %1173 = vmatprep.subr.mxu0 0.0
  %1174 = vmatpush2.msra.mxu0 0.0
  %1175 = vmatprep.subr.mxu0 0.0
  %1176 = vmatpush2.msra.mxu0 0.0
  %1177 = vmatprep.subr.mxu0 0.0
  %1178 = vmatpush2.msra.mxu0 0.0
  %1179 = vmatprep.mubr.f32.mxu0 0.0
  %1180 = vmatmul.mubr.f32.gmra.mxu0 %v1114
  %v1181 = vpop.f32.mrf.mxu0
  %v1182 = vadd.f32 0.0, %v1181
  %v1183 = vpop.f32.mrf.mxu0
  %v1184 = vadd.f32 0.0, %v1183
  %1185 = vdwg.mxu0
  %1186 = vmatprep.subr.mxu0 0.0
  %1187 = vmatpush1.msra.mxu0 %v70
  %1188 = vmatprep.subr.mxu0 0.0
  %1189 = vmatpush1.msra.mxu0 %v67
  %1190 = vmatprep.subr.mxu0 0.0
  %1191 = vmatpush1.msra.mxu0 %v64
  %1192 = vmatprep.subr.mxu0 0.0
  %1193 = vmatpush1.msra.mxu0 %v61
  %1194 = vmatprep.subr.mxu0 0.0
  %1195 = vmatpush1.msra.mxu0 %v58
  %1196 = vmatprep.subr.mxu0 0.0
  %1197 = vmatpush1.msra.mxu0 %v55
  %1198 = vmatprep.subr.mxu0 0.0
  %1199 = vmatpush1.msra.mxu0 %v52
  %1200 = vmatprep.subr.mxu0 0.0
  %1201 = vmatpush1.msra.mxu0 %v49
  %1202 = vmatprep.subr.mxu0 0.0
  %1203 = vmatpush1.msra.mxu0 %v46
  %1204 = vmatprep.subr.mxu0 0.0
  %1205 = vmatpush1.msra.mxu0 %v43
  %1206 = vmatprep.subr.mxu0 0.0
  %1207 = vmatpush1.msra.mxu0 %v40
  %1208 = vmatprep.subr.mxu0 0.0
  %1209 = vmatpush1.msra.mxu0 %v37
  %1210 = vmatprep.subr.mxu0 0.0
  %1211 = vmatpush1.msra.mxu0 %v34
  %1212 = vmatprep.subr.mxu0 0.0
  %1213 = vmatpush1.msra.mxu0 %v31
  %1214 = vmatprep.subr.mxu0 0.0
  %1215 = vmatpush1.msra.mxu0 %v28
  %1216 = vmatprep.subr.mxu0 0.0
  %1217 = vmatpush1.msra.mxu0 %v25
  %1218 = vmatprep.subr.mxu0 0.0
  %1219 = vmatpush2.msra.mxu0 0.0
  %1220 = vmatprep.subr.mxu0 0.0
  %1221 = vmatpush2.msra.mxu0 0.0
  %1222 = vmatprep.subr.mxu0 0.0
  %1223 = vmatpush2.msra.mxu0 0.0
  %1224 = vmatprep.subr.mxu0 0.0
  %1225 = vmatpush2.msra.mxu0 0.0
  %1226 = vmatprep.subr.mxu0 0.0
  %1227 = vmatpush2.msra.mxu0 0.0
  %1228 = vmatprep.subr.mxu0 0.0
  %1229 = vmatpush2.msra.mxu0 0.0
  %1230 = vmatprep.subr.mxu0 0.0
  %1231 = vmatpush2.msra.mxu0 0.0
  %1232 = vmatprep.subr.mxu0 0.0
  %1233 = vmatpush2.msra.mxu0 0.0
  %1234 = vmatprep.subr.mxu0 0.0
  %1235 = vmatpush2.msra.mxu0 0.0
  %1236 = vmatprep.subr.mxu0 0.0
  %1237 = vmatpush2.msra.mxu0 0.0
  %1238 = vmatprep.subr.mxu0 0.0
  %1239 = vmatpush2.msra.mxu0 0.0
  %1240 = vmatprep.subr.mxu0 0.0
  %1241 = vmatpush2.msra.mxu0 0.0
  %1242 = vmatprep.subr.mxu0 0.0
  %1243 = vmatpush2.msra.mxu0 0.0
  %1244 = vmatprep.subr.mxu0 0.0
  %1245 = vmatpush2.msra.mxu0 0.0
  %1246 = vmatprep.subr.mxu0 0.0
  %1247 = vmatpush2.msra.mxu0 0.0
  %1248 = vmatprep.subr.mxu0 0.0
  %1249 = vmatpush2.msra.mxu0 0.0
  %1250 = vmatprep.mubr.f32.mxu0 0.0
  %1251 = vmatmul.mubr.f32.gmra.mxu0 %v1114
  %v1252 = vpop.f32.mrf.mxu0
  %v1253 = vadd.f32 0.0, %v1252
  %v1254 = vpop.f32.mrf.mxu0
  %1255 = vdwg.mxu0
  %s1256 = scalar_lea.vmem %s0, 72
  %v1257 = vld [vmem:[%s1256] sm:$0xff]
  %v1258 = vld [vmem:[%s1256 + $0x8] sm:$0xf]
  %v1259 = vunpack.c.l.bf16 %v1257
  %v1260 = vunpack.c.h.bf16 %v1257
  %v1261 = vunpack.c.l.bf16 %v1258
  %v1262 = vadd.f32 %v1259, %v1182
  %v1263 = vxor.u32 %v1262, 2147483648
  %v1264 = vmul.f32 %v1263, 1.442695
  %v1265 = vpow.pop %v1264
  %v1266 = vadd.f32 %v1265, 1.0
  %v1267 = vrcp.pop %v1266
  %v1268 = vmul.f32 1.0, %v1267
  %v1269 = vadd.f32 %v1260, %v1184
  %v1270 = vxor.u32 %v1269, 2147483648
  %v1271 = vmul.f32 %v1270, 1.442695
  %v1272 = vpow.pop %v1271
  %v1273 = vadd.f32 %v1272, 1.0
  %v1274 = vrcp.pop %v1273
  %v1275 = vmul.f32 1.0, %v1274
  %v1276 = vadd.f32 %v1253, %v76
  %v1277 = vmul.f32 %v1268, %v1276
  %v1278 = vadd.f32 %v1261, %v1277
  %v1279 = vtanh.pop %v1278
  %v1280 = vsub.f32 %v1114, %v1279
  %v1281 = vmul.f32 %v1275, %v1280
  %v1282 = vadd.f32 %v1279, %v1281
  %1283 = vst [vmem:[#allocation2] sm:$0xff] %v1282
  %v1284 = vpack.c.bf16 %v1282, %v1282
  %s1285 = scalar_lea.vmem %s4, 24
  %1286 = vst [vmem:[%s1285] sm:$0xf] %v1284
  %v1287 = vld [vmem:[#allocation2] sm:$0xff]
  %1288 = vmatprep.subr.mxu0 %v69
  %1289 = vmatpush1.msra.mxu0 %v68
  %1290 = vmatprep.subr.mxu0 %v66
  %1291 = vmatpush1.msra.mxu0 %v65
  %1292 = vmatprep.subr.mxu0 %v63
  %1293 = vmatpush1.msra.mxu0 %v62
  %1294 = vmatprep.subr.mxu0 %v60
  %1295 = vmatpush1.msra.mxu0 %v59
  %1296 = vmatprep.subr.mxu0 %v57
  %1297 = vmatpush1.msra.mxu0 %v56
  %1298 = vmatprep.subr.mxu0 %v54
  %1299 = vmatpush1.msra.mxu0 %v53
  %1300 = vmatprep.subr.mxu0 %v51
  %1301 = vmatpush1.msra.mxu0 %v50
  %1302 = vmatprep.subr.mxu0 %v48
  %1303 = vmatpush1.msra.mxu0 %v47
  %1304 = vmatprep.subr.mxu0 %v45
  %1305 = vmatpush1.msra.mxu0 %v44
  %1306 = vmatprep.subr.mxu0 %v42
  %1307 = vmatpush1.msra.mxu0 %v41
  %1308 = vmatprep.subr.mxu0 %v39
  %1309 = vmatpush1.msra.mxu0 %v38
  %1310 = vmatprep.subr.mxu0 %v36
  %1311 = vmatpush1.msra.mxu0 %v35
  %1312 = vmatprep.subr.mxu0 %v33
  %1313 = vmatpush1.msra.mxu0 %v32
  %1314 = vmatprep.subr.mxu0 %v30
  %1315 = vmatpush1.msra.mxu0 %v29
  %1316 = vmatprep.subr.mxu0 %v27
  %1317 = vmatpush1.msra.mxu0 %v26
  %1318 = vmatprep.subr.mxu0 %v24
  %1319 = vmatpush1.msra.mxu0 %v23
  %1320 = vmatprep.subr.mxu0 0.0
  %1321 = vmatpush2.msra.mxu0 0.0
  %1322 = vmatprep.subr.mxu0 0.0
  %1323 = vmatpush2.msra.mxu0 0.0
  %1324 = vmatprep.subr.mxu0 0.0
  %1325 = vmatpush2.msra.mxu0 0.0
  %1326 = vmatprep.subr.mxu0 0.0
  %1327 = vmatpush2.msra.mxu0 0.0
  %1328 = vmatprep.subr.mxu0 0.0
  %1329 = vmatpush2.msra.mxu0 0.0
  %1330 = vmatprep.subr.mxu0 0.0
  %1331 = vmatpush2.msra.mxu0 0.0
  %1332 = vmatprep.subr.mxu0 0.0
  %1333 = vmatpush2.msra.mxu0 0.0
  %1334 = vmatprep.subr.mxu0 0.0
  %1335 = vmatpush2.msra.mxu0 0.0
  %1336 = vmatprep.subr.mxu0 0.0
  %1337 = vmatpush2.msra.mxu0 0.0
  %1338 = vmatprep.subr.mxu0 0.0
  %1339 = vmatpush2.msra.mxu0 0.0
  %1340 = vmatprep.subr.mxu0 0.0
  %1341 = vmatpush2.msra.mxu0 0.0
  %1342 = vmatprep.subr.mxu0 0.0
  %1343 = vmatpush2.msra.mxu0 0.0
  %1344 = vmatprep.subr.mxu0 0.0
  %1345 = vmatpush2.msra.mxu0 0.0
  %1346 = vmatprep.subr.mxu0 0.0
  %1347 = vmatpush2.msra.mxu0 0.0
  %1348 = vmatprep.subr.mxu0 0.0
  %1349 = vmatpush2.msra.mxu0 0.0
  %1350 = vmatprep.subr.mxu0 0.0
  %1351 = vmatpush2.msra.mxu0 0.0
  %1352 = vmatprep.mubr.f32.mxu0 0.0
  %1353 = vmatmul.mubr.f32.gmra.mxu0 %v1287
  %v1354 = vpop.f32.mrf.mxu0
  %v1355 = vadd.f32 0.0, %v1354
  %v1356 = vpop.f32.mrf.mxu0
  %v1357 = vadd.f32 0.0, %v1356
  %1358 = vdwg.mxu0
  %1359 = vmatprep.subr.mxu0 0.0
  %1360 = vmatpush1.msra.mxu0 %v70
  %1361 = vmatprep.subr.mxu0 0.0
  %1362 = vmatpush1.msra.mxu0 %v67
  %1363 = vmatprep.subr.mxu0 0.0
  %1364 = vmatpush1.msra.mxu0 %v64
  %1365 = vmatprep.subr.mxu0 0.0
  %1366 = vmatpush1.msra.mxu0 %v61
  %1367 = vmatprep.subr.mxu0 0.0
  %1368 = vmatpush1.msra.mxu0 %v58
  %1369 = vmatprep.subr.mxu0 0.0
  %1370 = vmatpush1.msra.mxu0 %v55
  %1371 = vmatprep.subr.mxu0 0.0
  %1372 = vmatpush1.msra.mxu0 %v52
  %1373 = vmatprep.subr.mxu0 0.0
  %1374 = vmatpush1.msra.mxu0 %v49
  %1375 = vmatprep.subr.mxu0 0.0
  %1376 = vmatpush1.msra.mxu0 %v46
  %1377 = vmatprep.subr.mxu0 0.0
  %1378 = vmatpush1.msra.mxu0 %v43
  %1379 = vmatprep.subr.mxu0 0.0
  %1380 = vmatpush1.msra.mxu0 %v40
  %1381 = vmatprep.subr.mxu0 0.0
  %1382 = vmatpush1.msra.mxu0 %v37
  %1383 = vmatprep.subr.mxu0 0.0
  %1384 = vmatpush1.msra.mxu0 %v34
  %1385 = vmatprep.subr.mxu0 0.0
  %1386 = vmatpush1.msra.mxu0 %v31
  %1387 = vmatprep.subr.mxu0 0.0
  %1388 = vmatpush1.msra.mxu0 %v28
  %1389 = vmatprep.subr.mxu0 0.0
  %1390 = vmatpush1.msra.mxu0 %v25
  %1391 = vmatprep.subr.mxu0 0.0
  %1392 = vmatpush2.msra.mxu0 0.0
  %1393 = vmatprep.subr.mxu0 0.0
  %1394 = vmatpush2.msra.mxu0 0.0
  %1395 = vmatprep.subr.mxu0 0.0
  %1396 = vmatpush2.msra.mxu0 0.0
  %1397 = vmatprep.subr.mxu0 0.0
  %1398 = vmatpush2.msra.mxu0 0.0
  %1399 = vmatprep.subr.mxu0 0.0
  %1400 = vmatpush2.msra.mxu0 0.0
  %1401 = vmatprep.subr.mxu0 0.0
  %1402 = vmatpush2.msra.mxu0 0.0
  %1403 = vmatprep.subr.mxu0 0.0
  %1404 = vmatpush2.msra.mxu0 0.0
  %1405 = vmatprep.subr.mxu0 0.0
  %1406 = vmatpush2.msra.mxu0 0.0
  %1407 = vmatprep.subr.mxu0 0.0
  %1408 = vmatpush2.msra.mxu0 0.0
  %1409 = vmatprep.subr.mxu0 0.0
  %1410 = vmatpush2.msra.mxu0 0.0
  %1411 = vmatprep.subr.mxu0 0.0
  %1412 = vmatpush2.msra.mxu0 0.0
  %1413 = vmatprep.subr.mxu0 0.0
  %1414 = vmatpush2.msra.mxu0 0.0
  %1415 = vmatprep.subr.mxu0 0.0
  %1416 = vmatpush2.msra.mxu0 0.0
  %1417 = vmatprep.subr.mxu0 0.0
  %1418 = vmatpush2.msra.mxu0 0.0
  %1419 = vmatprep.subr.mxu0 0.0
  %1420 = vmatpush2.msra.mxu0 0.0
  %1421 = vmatprep.subr.mxu0 0.0
  %1422 = vmatpush2.msra.mxu0 0.0
  %1423 = vmatprep.mubr.f32.mxu0 0.0
  %1424 = vmatmul.mubr.f32.gmra.mxu0 %v1287
  %v1425 = vpop.f32.mrf.mxu0
  %v1426 = vadd.f32 0.0, %v1425
  %v1427 = vpop.f32.mrf.mxu0
  %1428 = vdwg.mxu0
  %s1429 = scalar_lea.vmem %s0, 84
  %v1430 = vld [vmem:[%s1429] sm:$0xff]
  %v1431 = vld [vmem:[%s1429 + $0x8] sm:$0xf]
  %v1432 = vunpack.c.l.bf16 %v1430
  %v1433 = vunpack.c.h.bf16 %v1430
  %v1434 = vunpack.c.l.bf16 %v1431
  %v1435 = vadd.f32 %v1432, %v1355
  %v1436 = vxor.u32 %v1435, 2147483648
  %v1437 = vmul.f32 %v1436, 1.442695
  %v1438 = vpow.pop %v1437
  %v1439 = vadd.f32 %v1438, 1.0
  %v1440 = vrcp.pop %v1439
  %v1441 = vmul.f32 1.0, %v1440
  %v1442 = vadd.f32 %v1433, %v1357
  %v1443 = vxor.u32 %v1442, 2147483648
  %v1444 = vmul.f32 %v1443, 1.442695
  %v1445 = vpow.pop %v1444
  %v1446 = vadd.f32 %v1445, 1.0
  %v1447 = vrcp.pop %v1446
  %v1448 = vmul.f32 1.0, %v1447
  %v1449 = vadd.f32 %v1426, %v76
  %v1450 = vmul.f32 %v1441, %v1449
  %v1451 = vadd.f32 %v1434, %v1450
  %v1452 = vtanh.pop %v1451
  %v1453 = vsub.f32 %v1287, %v1452
  %v1454 = vmul.f32 %v1448, %v1453
  %v1455 = vadd.f32 %v1452, %v1454
  %1456 = vst [vmem:[#allocation2] sm:$0xff] %v1455
  %v1457 = vpack.c.bf16 %v1455, %v1455
  %s1458 = scalar_lea.vmem %s4, 28
  %1459 = vst [vmem:[%s1458] sm:$0xf] %v1457
  // Predicated region
  $region22: #{rnn_decoder_forward.4} parent=0 // pred_check
    _
  $region23: #{rnn_decoder_forward.4} parent=0 // pred_check_branch
    %1461 = sbr.rel (0) target = $region25
  $region24: #{rnn_decoder_forward.4} parent=0 // pred_region
    _
  $region25: #{rnn_decoder_forward.4} parent=0 // pred_fallthru
    _
  // Predicated region
  $region26: #{rnn_decoder_forward.4} parent=0 // pred_check
    _
  $region27: #{rnn_decoder_forward.4} parent=0 // pred_check_branch
    %1463 = sbr.rel (0) target = $region29
  $region28: #{rnn_decoder_forward.4} parent=0 // pred_region
    _
  $region29: #{rnn_decoder_forward.4} parent=0 // pred_fallthru
    _

</llo_original>
